<compile_context>
chip_gen: v7x
topology: tpu7x:2x2x1
jax: 0.10.0
libtpu: 0.0.40
codegen_flags: <defaults>
</compile_context>

<pallas_src>
import functools

import jax
import jax.numpy as jnp
from jax.experimental import pallas as pl
from jax.experimental.pallas import tpu as pltpu


def _vis_attention_kernel(vis_ref, bias_ref, we_ref, wf_ref, out_ref):
    # vis_ref:  (TB, N, E)   region features for TB batch elements
    # bias_ref: (TB, A)      precomputed decoder_att(hidden) + b_dec + b_enc
    # we_ref:   (E, A)       encoder_att weight (pre-transposed: x @ W)
    # wf_ref:   (1, A)       full_att weight as a row (for lane reduction)
    # out_ref:  (TB, E + N)  [:, :E] att_output, [:, E:] softmax scores
    tb, n, e = vis_ref.shape
    a = we_ref.shape[1]

    vis = vis_ref[...]                                            # (TB, N, E)

    # encoder_att for all TB*N regions in a single MXU matmul.
    enc = jnp.dot(vis.reshape(tb * n, e), we_ref[...],
                  preferred_element_type=jnp.float32)             # (TB*N, A)
    enc = enc.reshape(tb, n, a)

    # tanh(encoder_att + decoder_att + biases); bias_ref already folds
    # b_enc + (decoder_hidden_state @ w_dec + b_dec).
    join = jnp.tanh(enc + bias_ref[...][:, None, :])              # (TB, N, A)

    # full_att as broadcast-multiply + lane reduction -> lane-dense logits.
    # b_full is intentionally dropped: softmax is shift-invariant, so a scalar
    # added to every logit changes nothing downstream.
    logits = jnp.sum(join * wf_ref[...][None, :, :], axis=-1)     # (TB, N)

    # softmax over the region axis (lane axis), max-stabilized, all f32.
    m = jnp.max(logits, axis=-1, keepdims=True)                   # (TB, 1)
    p = jnp.exp(logits - m)                                       # (TB, N)
    s = jnp.sum(p, axis=-1, keepdims=True)                        # (TB, 1)
    scores = p * pl.reciprocal(s, approx=False)                   # (TB, N)

    # attention-weighted sum on the VPU: broadcast-multiply + sublane reduce.
    # (Avoids TB separate M=1 MXU matmuls that each fill a single sublane.)
    att = jnp.sum(scores[:, :, None] * vis, axis=1)               # (TB, E)

    # Single combined, lane-wider output store (one output DMA stream).
    out_ref[...] = jnp.concatenate([att, scores], axis=-1)        # (TB, E+N)


@functools.partial(jax.jit, static_argnames=("block_b",))
def vis_attention(vis_enc_out, decoder_hidden_state, params, *, block_b=16):
    """vis_enc_out: (B, N, E) f32; decoder_hidden_state: (B, H) f32."""
    B, N, E = vis_enc_out.shape
    A = params["w_enc"].shape[1]

    # Hoisted decoder projection: one dense (B, H) @ (H, A) matmul in XLA,
    # folded together with both additive biases into one per-batch row.
    dec_bias = (decoder_hidden_state @ params["w_dec"]
                + params["b_dec"] + params["b_enc"])              # (B, A)

    # Batch tile.  For small B (the common VisAttention case) a single grid
    # step covers the whole batch: no padding, no extra DMA round-trips, and
    # the encoder matmul gets its largest (B*N, E) M-extent.
    if B <= block_b:
        tb = B
        grid_b = 1
    else:
        # Multi-step path: keep tb sublane-aligned (multiple of 8).  For best
        # MXU fill at scale, pick block_b so tb*N is a multiple of 256 on
        # v6e/v7x (128 on v5e).  No wrapper-side padding: the final partial
        # block's out-of-range rows are independent and their writes masked.
        tb = max(8, (block_b // 8) * 8)
        grid_b = pl.cdiv(B, tb)

    wf = params["w_full"].reshape(1, A)      # (A, 1) -> (1, A) row

    grid_spec = pltpu.PrefetchScalarGridSpec(
        num_scalar_prefetch=0,
        grid=(grid_b,),
        in_specs=[
            pl.BlockSpec((tb, N, E), lambda b: (b, 0, 0)),   # vis tile
            pl.BlockSpec((tb, A), lambda b: (b, 0)),         # folded bias tile
            pl.BlockSpec((E, A), lambda b: (0, 0)),          # w_enc (constant)
            pl.BlockSpec((1, A), lambda b: (0, 0)),          # w_full row
        ],
        out_specs=pl.BlockSpec((tb, E + N), lambda b: (b, 0)),
    )

    combined = pl.pallas_call(
        _vis_attention_kernel,
        out_shape=jax.ShapeDtypeStruct((B, E + N), jnp.float32),
        grid_spec=grid_spec,
        compiler_params=pltpu.CompilerParams(
            dimension_semantics=("parallel",),
            vmem_limit_bytes=32 * 1024 * 1024,
        ),
    )(vis_enc_out, dec_bias, params["w_enc"], wf)

    att_out = combined[:, :E]
    att_scores = combined[:, E:]
    return att_out, att_scores


def _reference(vis_enc_out, decoder_hidden_state, params):
    """Pure-JAX reference mirroring the PyTorch forward (including b_full)."""
    enc_att = vis_enc_out @ params["w_enc"] + params["b_enc"]           # (B, N, A)
    dec_att = decoder_hidden_state @ params["w_dec"] + params["b_dec"]  # (B, A)
    join = jnp.tanh(enc_att + dec_att[:, None, :])                      # (B, N, A)
    logits = (join @ params["w_full"] + params["b_full"])[..., 0]       # (B, N)
    scores = jax.nn.softmax(logits, axis=1)
    att_output = jnp.sum(scores[:, :, None] * vis_enc_out, axis=1)      # (B, E)
    return att_output, scores


def _init_params(key, vis_enc_dim, sent_hidden_dim, att_dim):
    """Deterministic synthetic parameters (shapes match nn.Linear weights,
    stored pre-transposed so the math is x @ W + b)."""
    k = jax.random.split(key, 6)
    s_e = 1.0 / jnp.sqrt(vis_enc_dim)
    s_d = 1.0 / jnp.sqrt(sent_hidden_dim)
    s_f = 1.0 / jnp.sqrt(att_dim)
    return {
        "w_enc": jax.random.uniform(k[0], (vis_enc_dim, att_dim),
                                    jnp.float32, -s_e, s_e),
        "b_enc": jax.random.uniform(k[1], (1, att_dim), jnp.float32, -s_e, s_e),
        "w_dec": jax.random.uniform(k[2], (sent_hidden_dim, att_dim),
                                    jnp.float32, -s_d, s_d),
        "b_dec": jax.random.uniform(k[3], (1, att_dim), jnp.float32, -s_d, s_d),
        "w_full": jax.random.uniform(k[4], (att_dim, 1), jnp.float32, -s_f, s_f),
        "b_full": jax.random.uniform(k[5], (1, 1), jnp.float32, -s_f, s_f),
    }


if __name__ == "__main__":
    # batch, regions, vis_enc_dim, sent_hidden_dim, att_dim
    B, N, E, H, A = 16, 16, 32, 32, 16

    key = jax.random.PRNGKey(0)
    k_vis, k_hid, k_par = jax.random.split(key, 3)
    vis_enc_out = jax.random.normal(k_vis, (B, N, E), jnp.float32)
    decoder_hidden_state = jax.random.normal(k_hid, (B, H), jnp.float32)
    params = _init_params(k_par, E, H, A)

    # Default block_b=16 >= B -> single grid step covering the whole batch.
    att_output, att_scores = vis_attention(
        vis_enc_out, decoder_hidden_state, params)
    jax.block_until_ready((att_output, att_scores))

    ref_out, ref_scores = _reference(vis_enc_out, decoder_hidden_state, params)
    assert att_output.shape == (B, E) and att_scores.shape == (B, N)
    assert jnp.allclose(att_output, ref_out, atol=1e-5, rtol=1e-5)
    assert jnp.allclose(att_scores, ref_scores, atol=1e-5, rtol=1e-5)

    print("KERNEL_OK")
</pallas_src>

<mosaic_0001>
module attributes {stable_mosaic.version = 11 : i64} {
  func.func @_vis_attention_kernel(%arg0: i32, %arg1: memref<16x16x32xf32, #tpu.memory_space<vmem>>, %arg2: memref<16x16xf32, #tpu.memory_space<vmem>>, %arg3: memref<32x16xf32, #tpu.memory_space<vmem>>, %arg4: memref<1x16xf32, #tpu.memory_space<vmem>>, %arg5: memref<16x48xf32, #tpu.memory_space<vmem>>) attributes {dimension_semantics = [#tpu.dimension_semantics<parallel>], iteration_bounds = array<i64: 1>, scalar_prefetch = 0 : i64, scratch_operands = 0 : i64, tpu.core_type = #tpu.core_type<tc>, window_params = [{transform_indices = @transform_0, window_bounds = array<i64: 16, 16, 32>}, {transform_indices = @transform_1, window_bounds = array<i64: 16, 16>}, {pipeline_mode = #tpu.pipeline_mode<synchronous>, transform_indices = @transform_2, window_bounds = array<i64: 32, 16>}, {pipeline_mode = #tpu.pipeline_mode<synchronous>, transform_indices = @transform_3, window_bounds = array<i64: 1, 16>}, {transform_indices = @transform_4, window_bounds = array<i64: 16, 48>}]} {
    %c0 = arith.constant 0 : index
    %c0_0 = arith.constant 0 : index
    %c0_1 = arith.constant 0 : index
    %0 = vector.load %arg1[%c0, %c0_0, %c0_1] : memref<16x16x32xf32, #tpu.memory_space<vmem>>, vector<16x16x32xf32>
    %1 = vector.shape_cast %0 : vector<16x16x32xf32> to vector<256x32xf32>
    %c0_2 = arith.constant 0 : index
    %c0_3 = arith.constant 0 : index
    %2 = vector.load %arg3[%c0_2, %c0_3] : memref<32x16xf32, #tpu.memory_space<vmem>>, vector<32x16xf32>
    %cst = arith.constant dense<0.000000e+00> : vector<256x16xf32>
    %3 = tpu.matmul %1, %2, %cst {dimension_numbers = #tpu.dot_dimension_numbers<[1], [0], [0], [1], [0, 0, 1, 1], [], []>} : vector<256x32xf32>, vector<32x16xf32>, vector<256x16xf32> -> vector<256x16xf32>
    %4 = vector.shape_cast %3 : vector<256x16xf32> to vector<16x16x16xf32>
    %c0_4 = arith.constant 0 : index
    %c0_5 = arith.constant 0 : index
    %5 = vector.load %arg2[%c0_4, %c0_5] : memref<16x16xf32, #tpu.memory_space<vmem>>, vector<16x16xf32>
    %6 = vector.shape_cast %5 : vector<16x16xf32> to vector<16x1x16xf32>
    %7 = vector.broadcast %6 : vector<16x1x16xf32> to vector<16x16x16xf32>
    %8 = arith.addf %4, %7 : vector<16x16x16xf32>
    %9 = math.tanh %8 : vector<16x16x16xf32>
    %c0_6 = arith.constant 0 : index
    %c0_7 = arith.constant 0 : index
    %10 = vector.load %arg4[%c0_6, %c0_7] : memref<1x16xf32, #tpu.memory_space<vmem>>, vector<1x16xf32>
    %11 = vector.shape_cast %10 : vector<1x16xf32> to vector<1x1x16xf32>
    %12 = vector.broadcast %11 : vector<1x1x16xf32> to vector<16x16x16xf32>
    %13 = arith.mulf %9, %12 : vector<16x16x16xf32>
    %cst_8 = arith.constant dense<0.000000e+00> : vector<16x16xf32>
    %14 = vector.multi_reduction <add>, %13, %cst_8 [2] : vector<16x16x16xf32> to vector<16x16xf32>
    %cst_9 = arith.constant dense<0xFF800000> : vector<16xf32>
    %15 = vector.multi_reduction <maximumf>, %14, %cst_9 [1] : vector<16x16xf32> to vector<16xf32>
    %16 = vector.shape_cast %15 : vector<16xf32> to vector<16x1xf32>
    %17 = vector.broadcast %16 : vector<16x1xf32> to vector<16x16xf32>
    %18 = arith.subf %14, %17 : vector<16x16xf32>
    %19 = math.exp %18 : vector<16x16xf32>
    %cst_10 = arith.constant dense<0.000000e+00> : vector<16xf32>
    %20 = vector.multi_reduction <add>, %19, %cst_10 [1] : vector<16x16xf32> to vector<16xf32>
    %21 = vector.shape_cast %20 : vector<16xf32> to vector<16x1xf32>
    %22 = tpu.reciprocal %21 : vector<16x1xf32> -> vector<16x1xf32>
    %23 = vector.broadcast %22 : vector<16x1xf32> to vector<16x16xf32>
    %24 = arith.mulf %19, %23 : vector<16x16xf32>
    %25 = vector.shape_cast %24 : vector<16x16xf32> to vector<16x16x1xf32>
    %26 = vector.broadcast %25 : vector<16x16x1xf32> to vector<16x16x32xf32>
    %27 = arith.mulf %26, %0 : vector<16x16x32xf32>
    %cst_11 = arith.constant dense<0.000000e+00> : vector<16x32xf32>
    %28 = vector.multi_reduction <add>, %27, %cst_11 [1] : vector<16x16x32xf32> to vector<16x32xf32>
    %29 = tpu.concatenate %28, %24 in 1 : vector<16x32xf32>, vector<16x16xf32> -> vector<16x48xf32>
    %c0_12 = arith.constant 0 : index
    %c0_13 = arith.constant 0 : index
    %30 = vector.load %arg5[%c0_12, %c0_13] : memref<16x48xf32, #tpu.memory_space<vmem>>, vector<16x48xf32>
    tpu.vector_store %arg5[%c0_12, %c0_13], %29 {strides = array<i32>} : memref<16x48xf32, #tpu.memory_space<vmem>>, vector<16x48xf32>,
    return
  }
  func.func @transform_0(%arg0: i32) -> (i32, i32, i32) {
    %c0_i32 = arith.constant 0 : i32
    %c0_i32_0 = arith.constant 0 : i32
    %c0_i32_1 = arith.constant 0 : i32
    return %arg0, %c0_i32, %c0_i32_0 : i32, i32, i32
  }
  func.func @transform_1(%arg0: i32) -> (i32, i32) {
    %c0_i32 = arith.constant 0 : i32
    %c0_i32_0 = arith.constant 0 : i32
    return %arg0, %c0_i32 : i32, i32
  }
  func.func @transform_2(%arg0: i32) -> (i32, i32) {
    %c0_i32 = arith.constant 0 : i32
    %c0_i32_0 = arith.constant 0 : i32
    %c0_i32_1 = arith.constant 0 : i32
    return %c0_i32, %c0_i32_0 : i32, i32
  }
  func.func @transform_3(%arg0: i32) -> (i32, i32) {
    %c0_i32 = arith.constant 0 : i32
    %c0_i32_0 = arith.constant 0 : i32
    %c0_i32_1 = arith.constant 0 : i32
    return %c0_i32, %c0_i32_0 : i32, i32
  }
  func.func @transform_4(%arg0: i32) -> (i32, i32) {
    %c0_i32 = arith.constant 0 : i32
    %c0_i32_0 = arith.constant 0 : i32
    return %arg0, %c0_i32 : i32, i32
  }
}

</mosaic_0001>

<llo_original>
// kernel: vis_attention.1
$region0: #{vis_attention.1}
  #allocation0 [shape = 'u32[]', space=smem, size = 0x4, offset = 0x4, fixed_abs, tag = 'smem constant byte address 0x4 - core index']
  #allocation1 [shape = 'u32[144,128]{1,0:T(1,128)}', space=vmem, size = 0x12000, scoped, tag = 'internal scratch']
  %s0 = inlined_call_operand.hbm [shape: f32[16,16,32], index: 0, kind: input, shape index: {}]
  %s1 = inlined_call_operand.vmem [shape: f32[16,16], index: 1, kind: input, shape index: {}]
  %s2 = inlined_call_operand.vmem [shape: f32[32,16], index: 2, kind: input, shape index: {}]
  %s3 = inlined_call_operand.vmem [shape: f32[1,16], index: 3, kind: input, shape index: {}]
  %s4 = inlined_call_operand.vmem [shape: f32[16,48], index: 4, kind: output, shape index: {}]
  %s5 = sld [smem:[#allocation0]]
  $region30: #{vis_attention.1} parent=0
    _
  %s7 = ssub.s32 1, %s5
  %s8 = scalar_select 0, %s7, %s5
  $region1: #{vis_attention.1} parent=0
    #allocation2 [shape = 'u8[131072]{0}', space=vmem, size = 0x20000, scoped, tag = 'input window, operand 0, single buffered']
    #allocation3 [shape = 's32[1]{0}', space=sflag, size = 0x4, scoped, tag = 'scoped memory for vis_attention.1']
    %9 = vsyncpa [#allocation3], 0
    // Predicated region
    $region2: #{vis_attention.1} parent=1 // pred_check
      _
    $region3: #{vis_attention.1} parent=1 // pred_check_branch
      %11 = sbr.rel (0) target = $region5
    $region4: #{vis_attention.1} parent=1 // pred_region
      %s13 = ssub.s32 4096, 4096
      %14 = vsyncadd [#allocation3], %s13
      %s15 = sshll.u32 [#allocation2], 4
      %s16 = int_to_ptr.vmem [resolvable:$true] %s15
      %21 = dma.hbm_to_vmem [thread:$0]  %s0, 4096, %s16, [#allocation3], 128, 128, 8
    $region5: #{vis_attention.1} parent=1 // pred_fallthru
      _
    // Predicated region
    $region6: #{vis_attention.1} parent=1 // pred_check
      _
    $region7: #{vis_attention.1} parent=1 // pred_check_branch
      %23 = sbr.rel (0) target = $region9
    $region8: #{vis_attention.1} parent=1 // pred_region
      _
    $region9: #{vis_attention.1} parent=1 // pred_fallthru
      _
    // Predicated region
    $region10: #{vis_attention.1} parent=1 // pred_check
      _
    $region11: #{vis_attention.1} parent=1 // pred_check_branch
      %25 = sbr.rel (0) target = $region13
    $region12: #{vis_attention.1} parent=1 // pred_region
      _
    $region13: #{vis_attention.1} parent=1 // pred_fallthru
      _
    // Predicated region
    $region14: #{vis_attention.1} parent=1 // pred_check
      _
    $region15: #{vis_attention.1} parent=1 // pred_check_branch
      %27 = sbr.rel (0) target = $region17
    $region16: #{vis_attention.1} parent=1 // pred_region
      _
    $region17: #{vis_attention.1} parent=1 // pred_fallthru
      _
    // Predicated region
    $region18: #{vis_attention.1} parent=1 // pred_check
      _
    $region19: #{vis_attention.1} parent=1 // pred_check_branch
      %29 = sbr.rel (0) target = $region21
    $region20: #{vis_attention.1} parent=1 // pred_region
      %30 = dma.done [#allocation3], 4096
    $region21: #{vis_attention.1} parent=1 // pred_fallthru
      _
    %v31 = vld [vmem:[#allocation2] sm:$0xff]
    %v32 = vld [vmem:[#allocation2 + $0x8] sm:$0xff]
    %v33 = vld [vmem:[#allocation2 + $0x10] sm:$0xff]
    %v34 = vld [vmem:[#allocation2 + $0x18] sm:$0xff]
    %v35 = vld [vmem:[#allocation2 + $0x20] sm:$0xff]
    %v36 = vld [vmem:[#allocation2 + $0x28] sm:$0xff]
    %v37 = vld [vmem:[#allocation2 + $0x30] sm:$0xff]
    %v38 = vld [vmem:[#allocation2 + $0x38] sm:$0xff]
    %v39 = vld [vmem:[#allocation2 + $0x40] sm:$0xff]
    %v40 = vld [vmem:[#allocation2 + $0x48] sm:$0xff]
    %v41 = vld [vmem:[#allocation2 + $0x50] sm:$0xff]
    %v42 = vld [vmem:[#allocation2 + $0x58] sm:$0xff]
    %v43 = vld [vmem:[#allocation2 + $0x60] sm:$0xff]
    %v44 = vld [vmem:[#allocation2 + $0x68] sm:$0xff]
    %v45 = vld [vmem:[#allocation2 + $0x70] sm:$0xff]
    %v46 = vld [vmem:[#allocation2 + $0x78] sm:$0xff]
    %v47 = vld [vmem:[#allocation2 + $0x80] sm:$0xff]
    %v48 = vld [vmem:[#allocation2 + $0x88] sm:$0xff]
    %v49 = vld [vmem:[#allocation2 + $0x90] sm:$0xff]
    %v50 = vld [vmem:[#allocation2 + $0x98] sm:$0xff]
    %v51 = vld [vmem:[#allocation2 + $0xa0] sm:$0xff]
    %v52 = vld [vmem:[#allocation2 + $0xa8] sm:$0xff]
    %v53 = vld [vmem:[#allocation2 + $0xb0] sm:$0xff]
    %v54 = vld [vmem:[#allocation2 + $0xb8] sm:$0xff]
    %v55 = vld [vmem:[#allocation2 + $0xc0] sm:$0xff]
    %v56 = vld [vmem:[#allocation2 + $0xc8] sm:$0xff]
    %v57 = vld [vmem:[#allocation2 + $0xd0] sm:$0xff]
    %v58 = vld [vmem:[#allocation2 + $0xd8] sm:$0xff]
    %v59 = vld [vmem:[#allocation2 + $0xe0] sm:$0xff]
    %v60 = vld [vmem:[#allocation2 + $0xe8] sm:$0xff]
    %v61 = vld [vmem:[#allocation2 + $0xf0] sm:$0xff]
    %v62 = vld [vmem:[#allocation2 + $0xf8] sm:$0xff]
    %v63 = vld [vmem:[%s2] sm:$0xff]
    %v64 = vld [vmem:[%s2 + $0x8] sm:$0xff]
    %v65 = vld [vmem:[%s2 + $0x10] sm:$0xff]
    %v66 = vld [vmem:[%s2 + $0x18] sm:$0xff]
    %vm67 = vcmask 261120
    %v69 = vsel %vm67, %v31, 0
    %v72 = vsel %vm67, %v32, 0
    %v75 = vsel %vm67, %v33, 0
    %v78 = vsel %vm67, %v34, 0
    %v81 = vsel %vm67, %v35, 0
    %v84 = vsel %vm67, %v36, 0
    %v87 = vsel %vm67, %v37, 0
    %v90 = vsel %vm67, %v38, 0
    %v93 = vsel %vm67, %v39, 0
    %v96 = vsel %vm67, %v40, 0
    %v99 = vsel %vm67, %v41, 0
    %v102 = vsel %vm67, %v42, 0
    %v105 = vsel %vm67, %v43, 0
    %v108 = vsel %vm67, %v44, 0
    %v111 = vsel %vm67, %v45, 0
    %v114 = vsel %vm67, %v46, 0
    %v117 = vsel %vm67, %v47, 0
    %v120 = vsel %vm67, %v48, 0
    %v123 = vsel %vm67, %v49, 0
    %v126 = vsel %vm67, %v50, 0
    %v129 = vsel %vm67, %v51, 0
    %v132 = vsel %vm67, %v52, 0
    %v135 = vsel %vm67, %v53, 0
    %v138 = vsel %vm67, %v54, 0
    %v141 = vsel %vm67, %v55, 0
    %v144 = vsel %vm67, %v56, 0
    %v147 = vsel %vm67, %v57, 0
    %v150 = vsel %vm67, %v58, 0
    %v153 = vsel %vm67, %v59, 0
    %v156 = vsel %vm67, %v60, 0
    %v159 = vsel %vm67, %v61, 0
    %v162 = vsel %vm67, %v62, 0
    %164 = vmatprep.subr.mxu0 0.0
    %165 = vmatpush1.msra.mxu0 %v63
    %166 = vmatprep.subr.mxu0 0.0
    %167 = vmatpush1.msra.mxu0 %v64
    %168 = vmatprep.subr.mxu0 0.0
    %169 = vmatpush1.msra.mxu0 %v65
    %170 = vmatprep.subr.mxu0 0.0
    %171 = vmatpush1.msra.mxu0 %v66
    %172 = vmatprep.subr.mxu0 0.0
    %173 = vmatpush1.msra.mxu0 0.0
    %174 = vmatprep.subr.mxu0 0.0
    %175 = vmatpush1.msra.mxu0 0.0
    %176 = vmatprep.subr.mxu0 0.0
    %177 = vmatpush1.msra.mxu0 0.0
    %178 = vmatprep.subr.mxu0 0.0
    %179 = vmatpush1.msra.mxu0 0.0
    %180 = vmatprep.subr.mxu0 0.0
    %181 = vmatpush1.msra.mxu0 0.0
    %182 = vmatprep.subr.mxu0 0.0
    %183 = vmatpush1.msra.mxu0 0.0
    %184 = vmatprep.subr.mxu0 0.0
    %185 = vmatpush1.msra.mxu0 0.0
    %186 = vmatprep.subr.mxu0 0.0
    %187 = vmatpush1.msra.mxu0 0.0
    %188 = vmatprep.subr.mxu0 0.0
    %189 = vmatpush1.msra.mxu0 0.0
    %190 = vmatprep.subr.mxu0 0.0
    %191 = vmatpush1.msra.mxu0 0.0
    %192 = vmatprep.subr.mxu0 0.0
    %193 = vmatpush1.msra.mxu0 0.0
    %194 = vmatprep.subr.mxu0 0.0
    %195 = vmatpush1.msra.mxu0 0.0
    %196 = vmatprep.subr.mxu0 0.0
    %197 = vmatpush1.msra.mxu0 0.0
    %198 = vmatprep.subr.mxu0 0.0
    %199 = vmatpush1.msra.mxu0 0.0
    %200 = vmatprep.subr.mxu0 0.0
    %201 = vmatpush1.msra.mxu0 0.0
    %202 = vmatprep.subr.mxu0 0.0
    %203 = vmatpush1.msra.mxu0 0.0
    %204 = vmatprep.subr.mxu0 0.0
    %205 = vmatpush1.msra.mxu0 0.0
    %206 = vmatprep.subr.mxu0 0.0
    %207 = vmatpush1.msra.mxu0 0.0
    %208 = vmatprep.subr.mxu0 0.0
    %209 = vmatpush1.msra.mxu0 0.0
    %210 = vmatprep.subr.mxu0 0.0
    %211 = vmatpush1.msra.mxu0 0.0
    %212 = vmatprep.subr.mxu0 0.0
    %213 = vmatpush1.msra.mxu0 0.0
    %214 = vmatprep.subr.mxu0 0.0
    %215 = vmatpush1.msra.mxu0 0.0
    %216 = vmatprep.subr.mxu0 0.0
    %217 = vmatpush1.msra.mxu0 0.0
    %218 = vmatprep.subr.mxu0 0.0
    %219 = vmatpush1.msra.mxu0 0.0
    %220 = vmatprep.subr.mxu0 0.0
    %221 = vmatpush1.msra.mxu0 0.0
    %222 = vmatprep.subr.mxu0 0.0
    %223 = vmatpush1.msra.mxu0 0.0
    %224 = vmatprep.subr.mxu0 0.0
    %225 = vmatpush1.msra.mxu0 0.0
    %226 = vmatprep.subr.mxu0 0.0
    %227 = vmatpush1.msra.mxu0 0.0
    %228 = vmatprep.mubr.f32.mxu0 0.0
    %229 = vmatmul.mubr.f32.gmra.mrb[0].mxu0 %v69
    %v230 = vpop.f32.mrb[0].mxu0
    %v231 = vadd.f32 0.0, %v230
    %v232 = vpop.f32.mrb[0].mxu0
    %233 = vmatprep.mubr.f32.mxu0 0.0
    %234 = vmatmul.mubr.f32.gmra.mrb[0].mxu0 %v72
    %v235 = vpop.f32.mrb[0].mxu0
    %v236 = vadd.f32 0.0, %v235
    %v237 = vpop.f32.mrb[0].mxu0
    %238 = vmatprep.mubr.f32.mxu0 0.0
    %239 = vmatmul.mubr.f32.gmra.mrb[0].mxu0 %v75
    %v240 = vpop.f32.mrb[0].mxu0
    %v241 = vadd.f32 0.0, %v240
    %v242 = vpop.f32.mrb[0].mxu0
    %243 = vmatprep.mubr.f32.mxu0 0.0
    %244 = vmatmul.mubr.f32.gmra.mrb[0].mxu0 %v78
    %v245 = vpop.f32.mrb[0].mxu0
    %v246 = vadd.f32 0.0, %v245
    %v247 = vpop.f32.mrb[0].mxu0
    %248 = vmatprep.mubr.f32.mxu0 0.0
    %249 = vmatmul.mubr.f32.gmra.mrb[0].mxu0 %v81
    %v250 = vpop.f32.mrb[0].mxu0
    %v251 = vadd.f32 0.0, %v250
    %v252 = vpop.f32.mrb[0].mxu0
    %253 = vmatprep.mubr.f32.mxu0 0.0
    %254 = vmatmul.mubr.f32.gmra.mrb[0].mxu0 %v84
    %v255 = vpop.f32.mrb[0].mxu0
    %v256 = vadd.f32 0.0, %v255
    %v257 = vpop.f32.mrb[0].mxu0
    %258 = vmatprep.mubr.f32.mxu0 0.0
    %259 = vmatmul.mubr.f32.gmra.mrb[0].mxu0 %v87
    %v260 = vpop.f32.mrb[0].mxu0
    %v261 = vadd.f32 0.0, %v260
    %v262 = vpop.f32.mrb[0].mxu0
    %263 = vmatprep.mubr.f32.mxu0 0.0
    %264 = vmatmul.mubr.f32.gmra.mrb[0].mxu0 %v90
    %v265 = vpop.f32.mrb[0].mxu0
    %v266 = vadd.f32 0.0, %v265
    %v267 = vpop.f32.mrb[0].mxu0
    %268 = vmatprep.mubr.f32.mxu0 0.0
    %269 = vmatmul.mubr.f32.gmra.mrb[0].mxu0 %v93
    %v270 = vpop.f32.mrb[0].mxu0
    %v271 = vadd.f32 0.0, %v270
    %v272 = vpop.f32.mrb[0].mxu0
    %273 = vmatprep.mubr.f32.mxu0 0.0
    %274 = vmatmul.mubr.f32.gmra.mrb[0].mxu0 %v96
    %v275 = vpop.f32.mrb[0].mxu0
    %v276 = vadd.f32 0.0, %v275
    %v277 = vpop.f32.mrb[0].mxu0
    %278 = vmatprep.mubr.f32.mxu0 0.0
    %279 = vmatmul.mubr.f32.gmra.mrb[0].mxu0 %v99
    %v280 = vpop.f32.mrb[0].mxu0
    %v281 = vadd.f32 0.0, %v280
    %v282 = vpop.f32.mrb[0].mxu0
    %283 = vmatprep.mubr.f32.mxu0 0.0
    %284 = vmatmul.mubr.f32.gmra.mrb[0].mxu0 %v102
    %v285 = vpop.f32.mrb[0].mxu0
    %v286 = vadd.f32 0.0, %v285
    %v287 = vpop.f32.mrb[0].mxu0
    %288 = vmatprep.mubr.f32.mxu0 0.0
    %289 = vmatmul.mubr.f32.gmra.mrb[0].mxu0 %v105
    %v290 = vpop.f32.mrb[0].mxu0
    %v291 = vadd.f32 0.0, %v290
    %v292 = vpop.f32.mrb[0].mxu0
    %293 = vmatprep.mubr.f32.mxu0 0.0
    %294 = vmatmul.mubr.f32.gmra.mrb[0].mxu0 %v108
    %v295 = vpop.f32.mrb[0].mxu0
    %v296 = vadd.f32 0.0, %v295
    %v297 = vpop.f32.mrb[0].mxu0
    %298 = vmatprep.mubr.f32.mxu0 0.0
    %299 = vmatmul.mubr.f32.gmra.mrb[0].mxu0 %v111
    %v300 = vpop.f32.mrb[0].mxu0
    %v301 = vadd.f32 0.0, %v300
    %v302 = vpop.f32.mrb[0].mxu0
    %303 = vmatprep.mubr.f32.mxu0 0.0
    %304 = vmatmul.mubr.f32.gmra.mrb[0].mxu0 %v114
    %v305 = vpop.f32.mrb[0].mxu0
    %v306 = vadd.f32 0.0, %v305
    %v307 = vpop.f32.mrb[0].mxu0
    %308 = vmatprep.mubr.f32.mxu0 0.0
    %309 = vmatmul.mubr.f32.gmra.mrb[0].mxu0 %v117
    %v310 = vpop.f32.mrb[0].mxu0
    %v311 = vadd.f32 0.0, %v310
    %v312 = vpop.f32.mrb[0].mxu0
    %313 = vmatprep.mubr.f32.mxu0 0.0
    %314 = vmatmul.mubr.f32.gmra.mrb[0].mxu0 %v120
    %v315 = vpop.f32.mrb[0].mxu0
    %v316 = vadd.f32 0.0, %v315
    %v317 = vpop.f32.mrb[0].mxu0
    %318 = vmatprep.mubr.f32.mxu0 0.0
    %319 = vmatmul.mubr.f32.gmra.mrb[0].mxu0 %v123
    %v320 = vpop.f32.mrb[0].mxu0
    %v321 = vadd.f32 0.0, %v320
    %v322 = vpop.f32.mrb[0].mxu0
    %323 = vmatprep.mubr.f32.mxu0 0.0
    %324 = vmatmul.mubr.f32.gmra.mrb[0].mxu0 %v126
    %v325 = vpop.f32.mrb[0].mxu0
    %v326 = vadd.f32 0.0, %v325
    %v327 = vpop.f32.mrb[0].mxu0
    %328 = vmatprep.mubr.f32.mxu0 0.0
    %329 = vmatmul.mubr.f32.gmra.mrb[0].mxu0 %v129
    %v330 = vpop.f32.mrb[0].mxu0
    %v331 = vadd.f32 0.0, %v330
    %v332 = vpop.f32.mrb[0].mxu0
    %333 = vmatprep.mubr.f32.mxu0 0.0
    %334 = vmatmul.mubr.f32.gmra.mrb[0].mxu0 %v132
    %v335 = vpop.f32.mrb[0].mxu0
    %v336 = vadd.f32 0.0, %v335
    %v337 = vpop.f32.mrb[0].mxu0
    %338 = vmatprep.mubr.f32.mxu0 0.0
    %339 = vmatmul.mubr.f32.gmra.mrb[0].mxu0 %v135
    %v340 = vpop.f32.mrb[0].mxu0
    %v341 = vadd.f32 0.0, %v340
    %v342 = vpop.f32.mrb[0].mxu0
    %343 = vmatprep.mubr.f32.mxu0 0.0
    %344 = vmatmul.mubr.f32.gmra.mrb[0].mxu0 %v138
    %v345 = vpop.f32.mrb[0].mxu0
    %v346 = vadd.f32 0.0, %v345
    %v347 = vpop.f32.mrb[0].mxu0
    %348 = vmatprep.mubr.f32.mxu0 0.0
    %349 = vmatmul.mubr.f32.gmra.mrb[0].mxu0 %v141
    %v350 = vpop.f32.mrb[0].mxu0
    %v351 = vadd.f32 0.0, %v350
    %v352 = vpop.f32.mrb[0].mxu0
    %353 = vmatprep.mubr.f32.mxu0 0.0
    %354 = vmatmul.mubr.f32.gmra.mrb[0].mxu0 %v144
    %v355 = vpop.f32.mrb[0].mxu0
    %v356 = vadd.f32 0.0, %v355
    %v357 = vpop.f32.mrb[0].mxu0
    %358 = vmatprep.mubr.f32.mxu0 0.0
    %359 = vmatmul.mubr.f32.gmra.mrb[0].mxu0 %v147
    %v360 = vpop.f32.mrb[0].mxu0
    %v361 = vadd.f32 0.0, %v360
    %v362 = vpop.f32.mrb[0].mxu0
    %363 = vmatprep.mubr.f32.mxu0 0.0
    %364 = vmatmul.mubr.f32.gmra.mrb[0].mxu0 %v150
    %v365 = vpop.f32.mrb[0].mxu0
    %v366 = vadd.f32 0.0, %v365
    %v367 = vpop.f32.mrb[0].mxu0
    %368 = vmatprep.mubr.f32.mxu0 0.0
    %369 = vmatmul.mubr.f32.gmra.mrb[0].mxu0 %v153
    %v370 = vpop.f32.mrb[0].mxu0
    %v371 = vadd.f32 0.0, %v370
    %v372 = vpop.f32.mrb[0].mxu0
    %373 = vmatprep.mubr.f32.mxu0 0.0
    %374 = vmatmul.mubr.f32.gmra.mrb[0].mxu0 %v156
    %v375 = vpop.f32.mrb[0].mxu0
    %v376 = vadd.f32 0.0, %v375
    %v377 = vpop.f32.mrb[0].mxu0
    %378 = vmatprep.mubr.f32.mxu0 0.0
    %379 = vmatmul.mubr.f32.gmra.mrb[0].mxu0 %v159
    %v380 = vpop.f32.mrb[0].mxu0
    %v381 = vadd.f32 0.0, %v380
    %v382 = vpop.f32.mrb[0].mxu0
    %383 = vmatprep.mubr.f32.mxu0 0.0
    %384 = vmatmul.mubr.f32.gmra.mrb[0].mxu0 %v162
    %v385 = vpop.f32.mrb[0].mxu0
    %v386 = vadd.f32 0.0, %v385
    %v387 = vpop.f32.mrb[0].mxu0
    %388 = vdwg.mxu0
    %v389 = vld [vmem:[%s1] sm:$0xff]
    %v390 = vld [vmem:[%s1 + $0x8] sm:$0xff]
    %v393 = vcombine.high %v389, %v389
    %v395 = vunpack.c.l.s4 1966171168
    %v396 = vunpack.c.0.s8 %v395
    %v397 = vlaneseq
    %v398 = vshrl.u32 %v397, 7
    %v399 = vsub.s32 %v396, %v398
    %v400 = vrot.slane %v389, %v399
    %v402 = vunpack.c.l.s4 1966171168
    %v403 = vunpack.c.0.s8 %v402
    %v404 = vlaneseq
    %v405 = vshrl.u32 %v404, 7
    %v406 = vsub.s32 %v403, %v405
    %v407 = vrot.slane %v393, %v406
    %v408 = vcombine.high %v400, %v400
    %v409 = vcombine.high %v407, %v407
    %v411 = vunpack.c.l.s4 1966171168
    %v412 = vunpack.c.0.s8 %v411
    %v413 = vlaneseq
    %v414 = vshrl.u32 %v413, 7
    %v415 = vsub.s32 %v412, %v414
    %v416 = vrot.slane %v400, %v415
    %v418 = vunpack.c.l.s4 1966171168
    %v419 = vunpack.c.0.s8 %v418
    %v420 = vlaneseq
    %v421 = vshrl.u32 %v420, 7
    %v422 = vsub.s32 %v419, %v421
    %v423 = vrot.slane %v407, %v422
    %v425 = vunpack.c.l.s4 1966171168
    %v426 = vunpack.c.0.s8 %v425
    %v427 = vlaneseq
    %v428 = vshrl.u32 %v427, 7
    %v429 = vsub.s32 %v426, %v428
    %v430 = vrot.slane %v408, %v429
    %v432 = vunpack.c.l.s4 1966171168
    %v433 = vunpack.c.0.s8 %v432
    %v434 = vlaneseq
    %v435 = vshrl.u32 %v434, 7
    %v436 = vsub.s32 %v433, %v435
    %v437 = vrot.slane %v409, %v436
    %v438 = vcombine.high %v416, %v416
    %v439 = vcombine.high %v423, %v423
    %v440 = vcombine.high %v430, %v430
    %v441 = vcombine.high %v437, %v437
    %v442 = vcombine.high %v390, %v390
    %v444 = vunpack.c.l.s4 1966171168
    %v445 = vunpack.c.0.s8 %v444
    %v446 = vlaneseq
    %v447 = vshrl.u32 %v446, 7
    %v448 = vsub.s32 %v445, %v447
    %v449 = vrot.slane %v390, %v448
    %v451 = vunpack.c.l.s4 1966171168
    %v452 = vunpack.c.0.s8 %v451
    %v453 = vlaneseq
    %v454 = vshrl.u32 %v453, 7
    %v455 = vsub.s32 %v452, %v454
    %v456 = vrot.slane %v442, %v455
    %v457 = vcombine.high %v449, %v449
    %v458 = vcombine.high %v456, %v456
    %v460 = vunpack.c.l.s4 1966171168
    %v461 = vunpack.c.0.s8 %v460
    %v462 = vlaneseq
    %v463 = vshrl.u32 %v462, 7
    %v464 = vsub.s32 %v461, %v463
    %v465 = vrot.slane %v449, %v464
    %v467 = vunpack.c.l.s4 1966171168
    %v468 = vunpack.c.0.s8 %v467
    %v469 = vlaneseq
    %v470 = vshrl.u32 %v469, 7
    %v471 = vsub.s32 %v468, %v470
    %v472 = vrot.slane %v456, %v471
    %v474 = vunpack.c.l.s4 1966171168
    %v475 = vunpack.c.0.s8 %v474
    %v476 = vlaneseq
    %v477 = vshrl.u32 %v476, 7
    %v478 = vsub.s32 %v475, %v477
    %v479 = vrot.slane %v457, %v478
    %v481 = vunpack.c.l.s4 1966171168
    %v482 = vunpack.c.0.s8 %v481
    %v483 = vlaneseq
    %v484 = vshrl.u32 %v483, 7
    %v485 = vsub.s32 %v482, %v484
    %v486 = vrot.slane %v458, %v485
    %v487 = vcombine.high %v465, %v465
    %v488 = vcombine.high %v472, %v472
    %v489 = vcombine.high %v479, %v479
    %v490 = vcombine.high %v486, %v486
    %v491 = vlaneseq
    %v492 = vshrl.u32 %v491, 7
    %v493 = vsub.s32 0, %v492
    %v494 = vrot.slane %v416, %v493
    %v495 = vlaneseq
    %v496 = vshrl.u32 %v495, 7
    %v497 = vsub.s32 0, %v496
    %v498 = vrot.slane %v430, %v497
    %v499 = vlaneseq
    %v500 = vshrl.u32 %v499, 7
    %v501 = vsub.s32 0, %v500
    %v502 = vrot.slane %v438, %v501
    %v503 = vlaneseq
    %v504 = vshrl.u32 %v503, 7
    %v505 = vsub.s32 0, %v504
    %v506 = vrot.slane %v440, %v505
    %v507 = vlaneseq
    %v508 = vshrl.u32 %v507, 7
    %v509 = vsub.s32 0, %v508
    %v510 = vrot.slane %v423, %v509
    %v511 = vlaneseq
    %v512 = vshrl.u32 %v511, 7
    %v513 = vsub.s32 0, %v512
    %v514 = vrot.slane %v437, %v513
    %v515 = vlaneseq
    %v516 = vshrl.u32 %v515, 7
    %v517 = vsub.s32 0, %v516
    %v518 = vrot.slane %v439, %v517
    %v519 = vlaneseq
    %v520 = vshrl.u32 %v519, 7
    %v521 = vsub.s32 0, %v520
    %v522 = vrot.slane %v441, %v521
    %v523 = vlaneseq
    %v524 = vshrl.u32 %v523, 7
    %v525 = vsub.s32 0, %v524
    %v526 = vrot.slane %v465, %v525
    %v527 = vlaneseq
    %v528 = vshrl.u32 %v527, 7
    %v529 = vsub.s32 0, %v528
    %v530 = vrot.slane %v479, %v529
    %v531 = vlaneseq
    %v532 = vshrl.u32 %v531, 7
    %v533 = vsub.s32 0, %v532
    %v534 = vrot.slane %v487, %v533
    %v535 = vlaneseq
    %v536 = vshrl.u32 %v535, 7
    %v537 = vsub.s32 0, %v536
    %v538 = vrot.slane %v489, %v537
    %v539 = vlaneseq
    %v540 = vshrl.u32 %v539, 7
    %v541 = vsub.s32 0, %v540
    %v542 = vrot.slane %v472, %v541
    %v543 = vlaneseq
    %v544 = vshrl.u32 %v543, 7
    %v545 = vsub.s32 0, %v544
    %v546 = vrot.slane %v486, %v545
    %v547 = vlaneseq
    %v548 = vshrl.u32 %v547, 7
    %v549 = vsub.s32 0, %v548
    %v550 = vrot.slane %v488, %v549
    %v551 = vlaneseq
    %v552 = vshrl.u32 %v551, 7
    %v553 = vsub.s32 0, %v552
    %v554 = vrot.slane %v490, %v553
    %v571 = vadd.f32 %v231, %v494
    %v572 = vadd.f32 %v236, %v494
    %v573 = vadd.f32 %v241, %v498
    %v574 = vadd.f32 %v246, %v498
    %v575 = vadd.f32 %v251, %v502
    %v576 = vadd.f32 %v256, %v502
    %v577 = vadd.f32 %v261, %v506
    %v578 = vadd.f32 %v266, %v506
    %v579 = vadd.f32 %v271, %v510
    %v580 = vadd.f32 %v276, %v510
    %v581 = vadd.f32 %v281, %v514
    %v582 = vadd.f32 %v286, %v514
    %v583 = vadd.f32 %v291, %v518
    %v584 = vadd.f32 %v296, %v518
    %v585 = vadd.f32 %v301, %v522
    %v586 = vadd.f32 %v306, %v522
    %v587 = vadd.f32 %v311, %v526
    %v588 = vadd.f32 %v316, %v526
    %v589 = vadd.f32 %v321, %v530
    %v590 = vadd.f32 %v326, %v530
    %v591 = vadd.f32 %v331, %v534
    %v592 = vadd.f32 %v336, %v534
    %v593 = vadd.f32 %v341, %v538
    %v594 = vadd.f32 %v346, %v538
    %v595 = vadd.f32 %v351, %v542
    %v596 = vadd.f32 %v356, %v542
    %v597 = vadd.f32 %v361, %v546
    %v598 = vadd.f32 %v366, %v546
    %v599 = vadd.f32 %v371, %v550
    %v600 = vadd.f32 %v376, %v550
    %v601 = vadd.f32 %v381, %v554
    %v602 = vadd.f32 %v386, %v554
    %v603 = vtanh.pop %v571
    %v604 = vtanh.pop %v572
    %v605 = vtanh.pop %v573
    %v606 = vtanh.pop %v574
    %v607 = vtanh.pop %v575
    %v608 = vtanh.pop %v576
    %v609 = vtanh.pop %v577
    %v610 = vtanh.pop %v578
    %v611 = vtanh.pop %v579
    %v612 = vtanh.pop %v580
    %v613 = vtanh.pop %v581
    %v614 = vtanh.pop %v582
    %v615 = vtanh.pop %v583
    %v616 = vtanh.pop %v584
    %v617 = vtanh.pop %v585
    %v618 = vtanh.pop %v586
    %v619 = vtanh.pop %v587
    %v620 = vtanh.pop %v588
    %v621 = vtanh.pop %v589
    %v622 = vtanh.pop %v590
    %v623 = vtanh.pop %v591
    %v624 = vtanh.pop %v592
    %v625 = vtanh.pop %v593
    %v626 = vtanh.pop %v594
    %v627 = vtanh.pop %v595
    %v628 = vtanh.pop %v596
    %v629 = vtanh.pop %v597
    %v630 = vtanh.pop %v598
    %v631 = vtanh.pop %v599
    %v632 = vtanh.pop %v600
    %v633 = vtanh.pop %v601
    %v634 = vtanh.pop %v602
    %v635 = vld [vmem:[%s3] sm:$0x1]
    %v637 = vlaneseq
    %v638 = vshrl.u32 %v637, 7
    %v639 = vsub.s32 0, %v638
    %v640 = vrot.slane %v635, %v639
    %v642 = vmul.f32 %v603, %v640
    %v643 = vmul.f32 %v604, %v640
    %v644 = vmul.f32 %v605, %v640
    %v645 = vmul.f32 %v606, %v640
    %v646 = vmul.f32 %v607, %v640
    %v647 = vmul.f32 %v608, %v640
    %v648 = vmul.f32 %v609, %v640
    %v649 = vmul.f32 %v610, %v640
    %v650 = vmul.f32 %v611, %v640
    %v651 = vmul.f32 %v612, %v640
    %v652 = vmul.f32 %v613, %v640
    %v653 = vmul.f32 %v614, %v640
    %v654 = vmul.f32 %v615, %v640
    %v655 = vmul.f32 %v616, %v640
    %v656 = vmul.f32 %v617, %v640
    %v657 = vmul.f32 %v618, %v640
    %v658 = vmul.f32 %v619, %v640
    %v659 = vmul.f32 %v620, %v640
    %v660 = vmul.f32 %v621, %v640
    %v661 = vmul.f32 %v622, %v640
    %v662 = vmul.f32 %v623, %v640
    %v663 = vmul.f32 %v624, %v640
    %v664 = vmul.f32 %v625, %v640
    %v665 = vmul.f32 %v626, %v640
    %v666 = vmul.f32 %v627, %v640
    %v667 = vmul.f32 %v628, %v640
    %v668 = vmul.f32 %v629, %v640
    %v669 = vmul.f32 %v630, %v640
    %v670 = vmul.f32 %v631, %v640
    %v671 = vmul.f32 %v632, %v640
    %v672 = vmul.f32 %v633, %v640
    %v673 = vmul.f32 %v634, %v640
    %vm674 = vcmask 130048
    %v675 = vsel %vm674, %v642, 0.0
    %676 = vadd.xlane.f32.xlu0 %v675
    %v677 = vpop.xlane.xlu0 %676
    %v678 = vsel %vm674, %v643, 0.0
    %679 = vadd.xlane.f32.xlu0 %v678
    %v680 = vpop.xlane.xlu0 %679
    %v681 = vsel %vm674, %v644, 0.0
    %682 = vadd.xlane.f32.xlu0 %v681
    %v683 = vpop.xlane.xlu0 %682
    %v684 = vsel %vm674, %v645, 0.0
    %685 = vadd.xlane.f32.xlu0 %v684
    %v686 = vpop.xlane.xlu0 %685
    %v687 = vsel %vm674, %v646, 0.0
    %688 = vadd.xlane.f32.xlu0 %v687
    %v689 = vpop.xlane.xlu0 %688
    %v690 = vsel %vm674, %v647, 0.0
    %691 = vadd.xlane.f32.xlu0 %v690
    %v692 = vpop.xlane.xlu0 %691
    %v693 = vsel %vm674, %v648, 0.0
    %694 = vadd.xlane.f32.xlu0 %v693
    %v695 = vpop.xlane.xlu0 %694
    %v696 = vsel %vm674, %v649, 0.0
    %697 = vadd.xlane.f32.xlu0 %v696
    %v698 = vpop.xlane.xlu0 %697
    %v699 = vsel %vm674, %v650, 0.0
    %700 = vadd.xlane.f32.xlu0 %v699
    %v701 = vpop.xlane.xlu0 %700
    %v702 = vsel %vm674, %v651, 0.0
    %703 = vadd.xlane.f32.xlu0 %v702
    %v704 = vpop.xlane.xlu0 %703
    %v705 = vsel %vm674, %v652, 0.0
    %706 = vadd.xlane.f32.xlu0 %v705
    %v707 = vpop.xlane.xlu0 %706
    %v708 = vsel %vm674, %v653, 0.0
    %709 = vadd.xlane.f32.xlu0 %v708
    %v710 = vpop.xlane.xlu0 %709
    %v711 = vsel %vm674, %v654, 0.0
    %712 = vadd.xlane.f32.xlu0 %v711
    %v713 = vpop.xlane.xlu0 %712
    %v714 = vsel %vm674, %v655, 0.0
    %715 = vadd.xlane.f32.xlu0 %v714
    %v716 = vpop.xlane.xlu0 %715
    %v717 = vsel %vm674, %v656, 0.0
    %718 = vadd.xlane.f32.xlu0 %v717
    %v719 = vpop.xlane.xlu0 %718
    %v720 = vsel %vm674, %v657, 0.0
    %721 = vadd.xlane.f32.xlu0 %v720
    %v722 = vpop.xlane.xlu0 %721
    %v723 = vsel %vm674, %v658, 0.0
    %724 = vadd.xlane.f32.xlu0 %v723
    %v725 = vpop.xlane.xlu0 %724
    %v726 = vsel %vm674, %v659, 0.0
    %727 = vadd.xlane.f32.xlu0 %v726
    %v728 = vpop.xlane.xlu0 %727
    %v729 = vsel %vm674, %v660, 0.0
    %730 = vadd.xlane.f32.xlu0 %v729
    %v731 = vpop.xlane.xlu0 %730
    %v732 = vsel %vm674, %v661, 0.0
    %733 = vadd.xlane.f32.xlu0 %v732
    %v734 = vpop.xlane.xlu0 %733
    %v735 = vsel %vm674, %v662, 0.0
    %736 = vadd.xlane.f32.xlu0 %v735
    %v737 = vpop.xlane.xlu0 %736
    %v738 = vsel %vm674, %v663, 0.0
    %739 = vadd.xlane.f32.xlu0 %v738
    %v740 = vpop.xlane.xlu0 %739
    %v741 = vsel %vm674, %v664, 0.0
    %742 = vadd.xlane.f32.xlu0 %v741
    %v743 = vpop.xlane.xlu0 %742
    %v744 = vsel %vm674, %v665, 0.0
    %745 = vadd.xlane.f32.xlu0 %v744
    %v746 = vpop.xlane.xlu0 %745
    %v747 = vsel %vm674, %v666, 0.0
    %748 = vadd.xlane.f32.xlu0 %v747
    %v749 = vpop.xlane.xlu0 %748
    %v750 = vsel %vm674, %v667, 0.0
    %751 = vadd.xlane.f32.xlu0 %v750
    %v752 = vpop.xlane.xlu0 %751
    %v753 = vsel %vm674, %v668, 0.0
    %754 = vadd.xlane.f32.xlu0 %v753
    %v755 = vpop.xlane.xlu0 %754
    %v756 = vsel %vm674, %v669, 0.0
    %757 = vadd.xlane.f32.xlu0 %v756
    %v758 = vpop.xlane.xlu0 %757
    %v759 = vsel %vm674, %v670, 0.0
    %760 = vadd.xlane.f32.xlu0 %v759
    %v761 = vpop.xlane.xlu0 %760
    %v762 = vsel %vm674, %v671, 0.0
    %763 = vadd.xlane.f32.xlu0 %v762
    %v764 = vpop.xlane.xlu0 %763
    %v765 = vsel %vm674, %v672, 0.0
    %766 = vadd.xlane.f32.xlu0 %v765
    %v767 = vpop.xlane.xlu0 %766
    %v768 = vsel %vm674, %v673, 0.0
    %769 = vadd.xlane.f32.xlu0 %v768
    %v770 = vpop.xlane.xlu0 %769
    %v803 = vlaneseq
    %v804 = vand.u32 %v803, 127
    %v805 = vlaneseq
    %v806 = vshrl.u32 %v805, 7
    %v807 = vsub.s32 %v804, %v806
    %v808 = vrot.slane %v677, %v807
    %v809 = vadd.s32 %v804, 4294967288
    %v810 = vlaneseq
    %v811 = vshrl.u32 %v810, 7
    %v812 = vsub.s32 %v809, %v811
    %v813 = vrot.slane %v680, %v812
    %vm814 = vcmask 130112
    %v815 = vsel %vm814, %v813, %v808
    %v816 = vlaneseq
    %v817 = vshrl.u32 %v816, 7
    %v818 = vsub.s32 %v804, %v817
    %v819 = vrot.slane %v683, %v818
    %v820 = vlaneseq
    %v821 = vshrl.u32 %v820, 7
    %v822 = vsub.s32 %v809, %v821
    %v823 = vrot.slane %v686, %v822
    %v824 = vsel %vm814, %v823, %v819
    %v825 = vlaneseq
    %v826 = vshrl.u32 %v825, 7
    %v827 = vsub.s32 %v804, %v826
    %v828 = vrot.slane %v689, %v827
    %v829 = vlaneseq
    %v830 = vshrl.u32 %v829, 7
    %v831 = vsub.s32 %v809, %v830
    %v832 = vrot.slane %v692, %v831
    %v833 = vsel %vm814, %v832, %v828
    %v834 = vlaneseq
    %v835 = vshrl.u32 %v834, 7
    %v836 = vsub.s32 %v804, %v835
    %v837 = vrot.slane %v695, %v836
    %v838 = vlaneseq
    %v839 = vshrl.u32 %v838, 7
    %v840 = vsub.s32 %v809, %v839
    %v841 = vrot.slane %v698, %v840
    %v842 = vsel %vm814, %v841, %v837
    %v843 = vlaneseq
    %v844 = vshrl.u32 %v843, 7
    %v845 = vsub.s32 %v804, %v844
    %v846 = vrot.slane %v701, %v845
    %v847 = vlaneseq
    %v848 = vshrl.u32 %v847, 7
    %v849 = vsub.s32 %v809, %v848
    %v850 = vrot.slane %v704, %v849
    %v851 = vsel %vm814, %v850, %v846
    %v852 = vlaneseq
    %v853 = vshrl.u32 %v852, 7
    %v854 = vsub.s32 %v804, %v853
    %v855 = vrot.slane %v707, %v854
    %v856 = vlaneseq
    %v857 = vshrl.u32 %v856, 7
    %v858 = vsub.s32 %v809, %v857
    %v859 = vrot.slane %v710, %v858
    %v860 = vsel %vm814, %v859, %v855
    %v861 = vlaneseq
    %v862 = vshrl.u32 %v861, 7
    %v863 = vsub.s32 %v804, %v862
    %v864 = vrot.slane %v713, %v863
    %v865 = vlaneseq
    %v866 = vshrl.u32 %v865, 7
    %v867 = vsub.s32 %v809, %v866
    %v868 = vrot.slane %v716, %v867
    %v869 = vsel %vm814, %v868, %v864
    %v870 = vlaneseq
    %v871 = vshrl.u32 %v870, 7
    %v872 = vsub.s32 %v804, %v871
    %v873 = vrot.slane %v719, %v872
    %v874 = vlaneseq
    %v875 = vshrl.u32 %v874, 7
    %v876 = vsub.s32 %v809, %v875
    %v877 = vrot.slane %v722, %v876
    %v878 = vsel %vm814, %v877, %v873
    %v879 = vlaneseq
    %v880 = vshrl.u32 %v879, 7
    %v881 = vsub.s32 %v804, %v880
    %v882 = vrot.slane %v725, %v881
    %v883 = vlaneseq
    %v884 = vshrl.u32 %v883, 7
    %v885 = vsub.s32 %v809, %v884
    %v886 = vrot.slane %v728, %v885
    %v887 = vsel %vm814, %v886, %v882
    %v888 = vlaneseq
    %v889 = vshrl.u32 %v888, 7
    %v890 = vsub.s32 %v804, %v889
    %v891 = vrot.slane %v731, %v890
    %v892 = vlaneseq
    %v893 = vshrl.u32 %v892, 7
    %v894 = vsub.s32 %v809, %v893
    %v895 = vrot.slane %v734, %v894
    %v896 = vsel %vm814, %v895, %v891
    %v897 = vlaneseq
    %v898 = vshrl.u32 %v897, 7
    %v899 = vsub.s32 %v804, %v898
    %v900 = vrot.slane %v737, %v899
    %v901 = vlaneseq
    %v902 = vshrl.u32 %v901, 7
    %v903 = vsub.s32 %v809, %v902
    %v904 = vrot.slane %v740, %v903
    %v905 = vsel %vm814, %v904, %v900
    %v906 = vlaneseq
    %v907 = vshrl.u32 %v906, 7
    %v908 = vsub.s32 %v804, %v907
    %v909 = vrot.slane %v743, %v908
    %v910 = vlaneseq
    %v911 = vshrl.u32 %v910, 7
    %v912 = vsub.s32 %v809, %v911
    %v913 = vrot.slane %v746, %v912
    %v914 = vsel %vm814, %v913, %v909
    %v915 = vlaneseq
    %v916 = vshrl.u32 %v915, 7
    %v917 = vsub.s32 %v804, %v916
    %v918 = vrot.slane %v749, %v917
    %v919 = vlaneseq
    %v920 = vshrl.u32 %v919, 7
    %v921 = vsub.s32 %v809, %v920
    %v922 = vrot.slane %v752, %v921
    %v923 = vsel %vm814, %v922, %v918
    %v924 = vlaneseq
    %v925 = vshrl.u32 %v924, 7
    %v926 = vsub.s32 %v804, %v925
    %v927 = vrot.slane %v755, %v926
    %v928 = vlaneseq
    %v929 = vshrl.u32 %v928, 7
    %v930 = vsub.s32 %v809, %v929
    %v931 = vrot.slane %v758, %v930
    %v932 = vsel %vm814, %v931, %v927
    %v933 = vlaneseq
    %v934 = vshrl.u32 %v933, 7
    %v935 = vsub.s32 %v804, %v934
    %v936 = vrot.slane %v761, %v935
    %v937 = vlaneseq
    %v938 = vshrl.u32 %v937, 7
    %v939 = vsub.s32 %v809, %v938
    %v940 = vrot.slane %v764, %v939
    %v941 = vsel %vm814, %v940, %v936
    %v942 = vlaneseq
    %v943 = vshrl.u32 %v942, 7
    %v944 = vsub.s32 %v804, %v943
    %v945 = vrot.slane %v767, %v944
    %v946 = vlaneseq
    %v947 = vshrl.u32 %v946, 7
    %v948 = vsub.s32 %v809, %v947
    %v949 = vrot.slane %v770, %v948
    %v950 = vsel %vm814, %v949, %v945
    %vm951 = vcmask 1041409
    %v952 = vsel %vm951, %v824, %v815
    %vm953 = vcmask 1042434
    %v954 = vsel %vm953, %v833, %v952
    %vm955 = vcmask 1043459
    %v956 = vsel %vm955, %v842, %v954
    %vm957 = vcmask 1044484
    %v958 = vsel %vm957, %v851, %v956
    %vm959 = vcmask 1045509
    %v960 = vsel %vm959, %v860, %v958
    %vm961 = vcmask 1046534
    %v962 = vsel %vm961, %v869, %v960
    %vm963 = vcmask 1047559
    %v964 = vsel %vm963, %v878, %v962
    %v965 = vsel %vm951, %v896, %v887
    %v966 = vsel %vm953, %v905, %v965
    %v967 = vsel %vm955, %v914, %v966
    %v968 = vsel %vm957, %v923, %v967
    %v969 = vsel %vm959, %v932, %v968
    %v970 = vsel %vm961, %v941, %v969
    %v971 = vsel %vm963, %v950, %v970
    %v974 = vsel %vm674, %v964, -inf
    %975 = vmax.xlane.f32.xlu0 %v974
    %v976 = vpop.xlane.xlu0 %975
    %v977 = vsel %vm674, %v971, -inf
    %978 = vmax.xlane.f32.xlu0 %v977
    %v979 = vpop.xlane.xlu0 %978
    %v982 = vlaneseq
    %v983 = vshrl.u32 %v982, 7
    %v984 = vsub.s32 0, %v983
    %v985 = vrot.slane %v976, %v984
    %v986 = vlaneseq
    %v987 = vshrl.u32 %v986, 7
    %v988 = vsub.s32 1, %v987
    %v989 = vrot.slane %v976, %v988
    %v990 = vlaneseq
    %v991 = vshrl.u32 %v990, 7
    %v992 = vsub.s32 2, %v991
    %v993 = vrot.slane %v976, %v992
    %v994 = vlaneseq
    %v995 = vshrl.u32 %v994, 7
    %v996 = vsub.s32 3, %v995
    %v997 = vrot.slane %v976, %v996
    %v998 = vlaneseq
    %v999 = vshrl.u32 %v998, 7
    %v1000 = vsub.s32 4, %v999
    %v1001 = vrot.slane %v976, %v1000
    %v1002 = vlaneseq
    %v1003 = vshrl.u32 %v1002, 7
    %v1004 = vsub.s32 5, %v1003
    %v1005 = vrot.slane %v976, %v1004
    %v1006 = vlaneseq
    %v1007 = vshrl.u32 %v1006, 7
    %v1008 = vsub.s32 6, %v1007
    %v1009 = vrot.slane %v976, %v1008
    %v1010 = vlaneseq
    %v1011 = vshrl.u32 %v1010, 7
    %v1012 = vsub.s32 7, %v1011
    %v1013 = vrot.slane %v976, %v1012
    %v1014 = vlaneseq
    %v1015 = vshrl.u32 %v1014, 7
    %v1016 = vsub.s32 0, %v1015
    %v1017 = vrot.slane %v979, %v1016
    %v1018 = vlaneseq
    %v1019 = vshrl.u32 %v1018, 7
    %v1020 = vsub.s32 1, %v1019
    %v1021 = vrot.slane %v979, %v1020
    %v1022 = vlaneseq
    %v1023 = vshrl.u32 %v1022, 7
    %v1024 = vsub.s32 2, %v1023
    %v1025 = vrot.slane %v979, %v1024
    %v1026 = vlaneseq
    %v1027 = vshrl.u32 %v1026, 7
    %v1028 = vsub.s32 3, %v1027
    %v1029 = vrot.slane %v979, %v1028
    %v1030 = vlaneseq
    %v1031 = vshrl.u32 %v1030, 7
    %v1032 = vsub.s32 4, %v1031
    %v1033 = vrot.slane %v979, %v1032
    %v1034 = vlaneseq
    %v1035 = vshrl.u32 %v1034, 7
    %v1036 = vsub.s32 5, %v1035
    %v1037 = vrot.slane %v979, %v1036
    %v1038 = vlaneseq
    %v1039 = vshrl.u32 %v1038, 7
    %v1040 = vsub.s32 6, %v1039
    %v1041 = vrot.slane %v979, %v1040
    %v1042 = vlaneseq
    %v1043 = vshrl.u32 %v1042, 7
    %v1044 = vsub.s32 7, %v1043
    %v1045 = vrot.slane %v979, %v1044
    %v1062 = vsub.f32 %v677, %v985
    %v1063 = vsub.f32 %v680, %v985
    %v1064 = vsub.f32 %v683, %v989
    %v1065 = vsub.f32 %v686, %v989
    %v1066 = vsub.f32 %v689, %v993
    %v1067 = vsub.f32 %v692, %v993
    %v1068 = vsub.f32 %v695, %v997
    %v1069 = vsub.f32 %v698, %v997
    %v1070 = vsub.f32 %v701, %v1001
    %v1071 = vsub.f32 %v704, %v1001
    %v1072 = vsub.f32 %v707, %v1005
    %v1073 = vsub.f32 %v710, %v1005
    %v1074 = vsub.f32 %v713, %v1009
    %v1075 = vsub.f32 %v716, %v1009
    %v1076 = vsub.f32 %v719, %v1013
    %v1077 = vsub.f32 %v722, %v1013
    %v1078 = vsub.f32 %v725, %v1017
    %v1079 = vsub.f32 %v728, %v1017
    %v1080 = vsub.f32 %v731, %v1021
    %v1081 = vsub.f32 %v734, %v1021
    %v1082 = vsub.f32 %v737, %v1025
    %v1083 = vsub.f32 %v740, %v1025
    %v1084 = vsub.f32 %v743, %v1029
    %v1085 = vsub.f32 %v746, %v1029
    %v1086 = vsub.f32 %v749, %v1033
    %v1087 = vsub.f32 %v752, %v1033
    %v1088 = vsub.f32 %v755, %v1037
    %v1089 = vsub.f32 %v758, %v1037
    %v1090 = vsub.f32 %v761, %v1041
    %v1091 = vsub.f32 %v764, %v1041
    %v1092 = vsub.f32 %v767, %v1045
    %v1093 = vsub.f32 %v770, %v1045
    %v1094 = vmul.f32 %v1062, 1.442695
    %v1095 = vpow.pop %v1094
    %v1096 = vmul.f32 %v1063, 1.442695
    %v1097 = vpow.pop %v1096
    %v1098 = vmul.f32 %v1064, 1.442695
    %v1099 = vpow.pop %v1098
    %v1100 = vmul.f32 %v1065, 1.442695
    %v1101 = vpow.pop %v1100
    %v1102 = vmul.f32 %v1066, 1.442695
    %v1103 = vpow.pop %v1102
    %v1104 = vmul.f32 %v1067, 1.442695
    %v1105 = vpow.pop %v1104
    %v1106 = vmul.f32 %v1068, 1.442695
    %v1107 = vpow.pop %v1106
    %v1108 = vmul.f32 %v1069, 1.442695
    %v1109 = vpow.pop %v1108
    %v1110 = vmul.f32 %v1070, 1.442695
    %v1111 = vpow.pop %v1110
    %v1112 = vmul.f32 %v1071, 1.442695
    %v1113 = vpow.pop %v1112
    %v1114 = vmul.f32 %v1072, 1.442695
    %v1115 = vpow.pop %v1114
    %v1116 = vmul.f32 %v1073, 1.442695
    %v1117 = vpow.pop %v1116
    %v1118 = vmul.f32 %v1074, 1.442695
    %v1119 = vpow.pop %v1118
    %v1120 = vmul.f32 %v1075, 1.442695
    %v1121 = vpow.pop %v1120
    %v1122 = vmul.f32 %v1076, 1.442695
    %v1123 = vpow.pop %v1122
    %v1124 = vmul.f32 %v1077, 1.442695
    %v1125 = vpow.pop %v1124
    %v1126 = vmul.f32 %v1078, 1.442695
    %v1127 = vpow.pop %v1126
    %v1128 = vmul.f32 %v1079, 1.442695
    %v1129 = vpow.pop %v1128
    %v1130 = vmul.f32 %v1080, 1.442695
    %v1131 = vpow.pop %v1130
    %v1132 = vmul.f32 %v1081, 1.442695
    %v1133 = vpow.pop %v1132
    %v1134 = vmul.f32 %v1082, 1.442695
    %v1135 = vpow.pop %v1134
    %v1136 = vmul.f32 %v1083, 1.442695
    %v1137 = vpow.pop %v1136
    %v1138 = vmul.f32 %v1084, 1.442695
    %v1139 = vpow.pop %v1138
    %v1140 = vmul.f32 %v1085, 1.442695
    %v1141 = vpow.pop %v1140
    %v1142 = vmul.f32 %v1086, 1.442695
    %v1143 = vpow.pop %v1142
    %v1144 = vmul.f32 %v1087, 1.442695
    %v1145 = vpow.pop %v1144
    %v1146 = vmul.f32 %v1088, 1.442695
    %v1147 = vpow.pop %v1146
    %v1148 = vmul.f32 %v1089, 1.442695
    %v1149 = vpow.pop %v1148
    %v1150 = vmul.f32 %v1090, 1.442695
    %v1151 = vpow.pop %v1150
    %v1152 = vmul.f32 %v1091, 1.442695
    %v1153 = vpow.pop %v1152
    %v1154 = vmul.f32 %v1092, 1.442695
    %v1155 = vpow.pop %v1154
    %v1156 = vmul.f32 %v1093, 1.442695
    %v1157 = vpow.pop %v1156
    %1190 = vset.pattern.permute.xlu0 0
    %1191 = vperm.xlu0 %1190, %v1095
    %v1192 = vpop.permute.xlu0 %1191
    %1193 = vset.pattern.permute.xlu0 0
    %1194 = vperm.xlu0 %1193, %v1097
    %v1195 = vpop.permute.xlu0 %1194
    %1196 = vset.pattern.permute.xlu0 0
    %1197 = vperm.xlu0 %1196, %v1099
    %v1198 = vpop.permute.xlu0 %1197
    %1199 = vset.pattern.permute.xlu0 0
    %1200 = vperm.xlu0 %1199, %v1101
    %v1201 = vpop.permute.xlu0 %1200
    %1202 = vset.pattern.permute.xlu0 0
    %1203 = vperm.xlu0 %1202, %v1103
    %v1204 = vpop.permute.xlu0 %1203
    %1205 = vset.pattern.permute.xlu0 0
    %1206 = vperm.xlu0 %1205, %v1105
    %v1207 = vpop.permute.xlu0 %1206
    %1208 = vset.pattern.permute.xlu0 0
    %1209 = vperm.xlu0 %1208, %v1107
    %v1210 = vpop.permute.xlu0 %1209
    %1211 = vset.pattern.permute.xlu0 0
    %1212 = vperm.xlu0 %1211, %v1109
    %v1213 = vpop.permute.xlu0 %1212
    %1214 = vset.pattern.permute.xlu0 0
    %1215 = vperm.xlu0 %1214, %v1111
    %v1216 = vpop.permute.xlu0 %1215
    %1217 = vset.pattern.permute.xlu0 0
    %1218 = vperm.xlu0 %1217, %v1113
    %v1219 = vpop.permute.xlu0 %1218
    %1220 = vset.pattern.permute.xlu0 0
    %1221 = vperm.xlu0 %1220, %v1115
    %v1222 = vpop.permute.xlu0 %1221
    %1223 = vset.pattern.permute.xlu0 0
    %1224 = vperm.xlu0 %1223, %v1117
    %v1225 = vpop.permute.xlu0 %1224
    %1226 = vset.pattern.permute.xlu0 0
    %1227 = vperm.xlu0 %1226, %v1119
    %v1228 = vpop.permute.xlu0 %1227
    %1229 = vset.pattern.permute.xlu0 0
    %1230 = vperm.xlu0 %1229, %v1121
    %v1231 = vpop.permute.xlu0 %1230
    %1232 = vset.pattern.permute.xlu0 0
    %1233 = vperm.xlu0 %1232, %v1123
    %v1234 = vpop.permute.xlu0 %1233
    %1235 = vset.pattern.permute.xlu0 0
    %1236 = vperm.xlu0 %1235, %v1125
    %v1237 = vpop.permute.xlu0 %1236
    %1238 = vset.pattern.permute.xlu0 0
    %1239 = vperm.xlu0 %1238, %v1127
    %v1240 = vpop.permute.xlu0 %1239
    %1241 = vset.pattern.permute.xlu0 0
    %1242 = vperm.xlu0 %1241, %v1129
    %v1243 = vpop.permute.xlu0 %1242
    %1244 = vset.pattern.permute.xlu0 0
    %1245 = vperm.xlu0 %1244, %v1131
    %v1246 = vpop.permute.xlu0 %1245
    %1247 = vset.pattern.permute.xlu0 0
    %1248 = vperm.xlu0 %1247, %v1133
    %v1249 = vpop.permute.xlu0 %1248
    %1250 = vset.pattern.permute.xlu0 0
    %1251 = vperm.xlu0 %1250, %v1135
    %v1252 = vpop.permute.xlu0 %1251
    %1253 = vset.pattern.permute.xlu0 0
    %1254 = vperm.xlu0 %1253, %v1137
    %v1255 = vpop.permute.xlu0 %1254
    %1256 = vset.pattern.permute.xlu0 0
    %1257 = vperm.xlu0 %1256, %v1139
    %v1258 = vpop.permute.xlu0 %1257
    %1259 = vset.pattern.permute.xlu0 0
    %1260 = vperm.xlu0 %1259, %v1141
    %v1261 = vpop.permute.xlu0 %1260
    %1262 = vset.pattern.permute.xlu0 0
    %1263 = vperm.xlu0 %1262, %v1143
    %v1264 = vpop.permute.xlu0 %1263
    %1265 = vset.pattern.permute.xlu0 0
    %1266 = vperm.xlu0 %1265, %v1145
    %v1267 = vpop.permute.xlu0 %1266
    %1268 = vset.pattern.permute.xlu0 0
    %1269 = vperm.xlu0 %1268, %v1147
    %v1270 = vpop.permute.xlu0 %1269
    %1271 = vset.pattern.permute.xlu0 0
    %1272 = vperm.xlu0 %1271, %v1149
    %v1273 = vpop.permute.xlu0 %1272
    %1274 = vset.pattern.permute.xlu0 0
    %1275 = vperm.xlu0 %1274, %v1151
    %v1276 = vpop.permute.xlu0 %1275
    %1277 = vset.pattern.permute.xlu0 0
    %1278 = vperm.xlu0 %1277, %v1153
    %v1279 = vpop.permute.xlu0 %1278
    %1280 = vset.pattern.permute.xlu0 0
    %1281 = vperm.xlu0 %1280, %v1155
    %v1282 = vpop.permute.xlu0 %1281
    %1283 = vset.pattern.permute.xlu0 0
    %1284 = vperm.xlu0 %1283, %v1157
    %v1285 = vpop.permute.xlu0 %1284
    %v1286 = vlaneseq
    %v1287 = vshrl.u32 %v1286, 7
    %v1288 = vsub.s32 %v804, %v1287
    %v1289 = vrot.slane %v1192, %v1288
    %v1290 = vlaneseq
    %v1291 = vshrl.u32 %v1290, 7
    %v1292 = vsub.s32 %v809, %v1291
    %v1293 = vrot.slane %v1195, %v1292
    %v1294 = vsel %vm814, %v1293, %v1289
    %v1295 = vlaneseq
    %v1296 = vshrl.u32 %v1295, 7
    %v1297 = vsub.s32 %v804, %v1296
    %v1298 = vrot.slane %v1198, %v1297
    %v1299 = vlaneseq
    %v1300 = vshrl.u32 %v1299, 7
    %v1301 = vsub.s32 %v809, %v1300
    %v1302 = vrot.slane %v1201, %v1301
    %v1303 = vsel %vm814, %v1302, %v1298
    %v1304 = vlaneseq
    %v1305 = vshrl.u32 %v1304, 7
    %v1306 = vsub.s32 %v804, %v1305
    %v1307 = vrot.slane %v1204, %v1306
    %v1308 = vlaneseq
    %v1309 = vshrl.u32 %v1308, 7
    %v1310 = vsub.s32 %v809, %v1309
    %v1311 = vrot.slane %v1207, %v1310
    %v1312 = vsel %vm814, %v1311, %v1307
    %v1313 = vlaneseq
    %v1314 = vshrl.u32 %v1313, 7
    %v1315 = vsub.s32 %v804, %v1314
    %v1316 = vrot.slane %v1210, %v1315
    %v1317 = vlaneseq
    %v1318 = vshrl.u32 %v1317, 7
    %v1319 = vsub.s32 %v809, %v1318
    %v1320 = vrot.slane %v1213, %v1319
    %v1321 = vsel %vm814, %v1320, %v1316
    %v1322 = vlaneseq
    %v1323 = vshrl.u32 %v1322, 7
    %v1324 = vsub.s32 %v804, %v1323
    %v1325 = vrot.slane %v1216, %v1324
    %v1326 = vlaneseq
    %v1327 = vshrl.u32 %v1326, 7
    %v1328 = vsub.s32 %v809, %v1327
    %v1329 = vrot.slane %v1219, %v1328
    %v1330 = vsel %vm814, %v1329, %v1325
    %v1331 = vlaneseq
    %v1332 = vshrl.u32 %v1331, 7
    %v1333 = vsub.s32 %v804, %v1332
    %v1334 = vrot.slane %v1222, %v1333
    %v1335 = vlaneseq
    %v1336 = vshrl.u32 %v1335, 7
    %v1337 = vsub.s32 %v809, %v1336
    %v1338 = vrot.slane %v1225, %v1337
    %v1339 = vsel %vm814, %v1338, %v1334
    %v1340 = vlaneseq
    %v1341 = vshrl.u32 %v1340, 7
    %v1342 = vsub.s32 %v804, %v1341
    %v1343 = vrot.slane %v1228, %v1342
    %v1344 = vlaneseq
    %v1345 = vshrl.u32 %v1344, 7
    %v1346 = vsub.s32 %v809, %v1345
    %v1347 = vrot.slane %v1231, %v1346
    %v1348 = vsel %vm814, %v1347, %v1343
    %v1349 = vlaneseq
    %v1350 = vshrl.u32 %v1349, 7
    %v1351 = vsub.s32 %v804, %v1350
    %v1352 = vrot.slane %v1234, %v1351
    %v1353 = vlaneseq
    %v1354 = vshrl.u32 %v1353, 7
    %v1355 = vsub.s32 %v809, %v1354
    %v1356 = vrot.slane %v1237, %v1355
    %v1357 = vsel %vm814, %v1356, %v1352
    %v1358 = vlaneseq
    %v1359 = vshrl.u32 %v1358, 7
    %v1360 = vsub.s32 %v804, %v1359
    %v1361 = vrot.slane %v1240, %v1360
    %v1362 = vlaneseq
    %v1363 = vshrl.u32 %v1362, 7
    %v1364 = vsub.s32 %v809, %v1363
    %v1365 = vrot.slane %v1243, %v1364
    %v1366 = vsel %vm814, %v1365, %v1361
    %v1367 = vlaneseq
    %v1368 = vshrl.u32 %v1367, 7
    %v1369 = vsub.s32 %v804, %v1368
    %v1370 = vrot.slane %v1246, %v1369
    %v1371 = vlaneseq
    %v1372 = vshrl.u32 %v1371, 7
    %v1373 = vsub.s32 %v809, %v1372
    %v1374 = vrot.slane %v1249, %v1373
    %v1375 = vsel %vm814, %v1374, %v1370
    %v1376 = vlaneseq
    %v1377 = vshrl.u32 %v1376, 7
    %v1378 = vsub.s32 %v804, %v1377
    %v1379 = vrot.slane %v1252, %v1378
    %v1380 = vlaneseq
    %v1381 = vshrl.u32 %v1380, 7
    %v1382 = vsub.s32 %v809, %v1381
    %v1383 = vrot.slane %v1255, %v1382
    %v1384 = vsel %vm814, %v1383, %v1379
    %v1385 = vlaneseq
    %v1386 = vshrl.u32 %v1385, 7
    %v1387 = vsub.s32 %v804, %v1386
    %v1388 = vrot.slane %v1258, %v1387
    %v1389 = vlaneseq
    %v1390 = vshrl.u32 %v1389, 7
    %v1391 = vsub.s32 %v809, %v1390
    %v1392 = vrot.slane %v1261, %v1391
    %v1393 = vsel %vm814, %v1392, %v1388
    %v1394 = vlaneseq
    %v1395 = vshrl.u32 %v1394, 7
    %v1396 = vsub.s32 %v804, %v1395
    %v1397 = vrot.slane %v1264, %v1396
    %v1398 = vlaneseq
    %v1399 = vshrl.u32 %v1398, 7
    %v1400 = vsub.s32 %v809, %v1399
    %v1401 = vrot.slane %v1267, %v1400
    %v1402 = vsel %vm814, %v1401, %v1397
    %v1403 = vlaneseq
    %v1404 = vshrl.u32 %v1403, 7
    %v1405 = vsub.s32 %v804, %v1404
    %v1406 = vrot.slane %v1270, %v1405
    %v1407 = vlaneseq
    %v1408 = vshrl.u32 %v1407, 7
    %v1409 = vsub.s32 %v809, %v1408
    %v1410 = vrot.slane %v1273, %v1409
    %v1411 = vsel %vm814, %v1410, %v1406
    %v1412 = vlaneseq
    %v1413 = vshrl.u32 %v1412, 7
    %v1414 = vsub.s32 %v804, %v1413
    %v1415 = vrot.slane %v1276, %v1414
    %v1416 = vlaneseq
    %v1417 = vshrl.u32 %v1416, 7
    %v1418 = vsub.s32 %v809, %v1417
    %v1419 = vrot.slane %v1279, %v1418
    %v1420 = vsel %vm814, %v1419, %v1415
    %v1421 = vlaneseq
    %v1422 = vshrl.u32 %v1421, 7
    %v1423 = vsub.s32 %v804, %v1422
    %v1424 = vrot.slane %v1282, %v1423
    %v1425 = vlaneseq
    %v1426 = vshrl.u32 %v1425, 7
    %v1427 = vsub.s32 %v809, %v1426
    %v1428 = vrot.slane %v1285, %v1427
    %v1429 = vsel %vm814, %v1428, %v1424
    %v1430 = vsel %vm951, %v1303, %v1294
    %v1431 = vsel %vm953, %v1312, %v1430
    %v1432 = vsel %vm955, %v1321, %v1431
    %v1433 = vsel %vm957, %v1330, %v1432
    %v1434 = vsel %vm959, %v1339, %v1433
    %v1435 = vsel %vm961, %v1348, %v1434
    %v1436 = vsel %vm963, %v1357, %v1435
    %v1437 = vsel %vm951, %v1375, %v1366
    %v1438 = vsel %vm953, %v1384, %v1437
    %v1439 = vsel %vm955, %v1393, %v1438
    %v1440 = vsel %vm957, %v1402, %v1439
    %v1441 = vsel %vm959, %v1411, %v1440
    %v1442 = vsel %vm961, %v1420, %v1441
    %v1443 = vsel %vm963, %v1429, %v1442
    %v1446 = vsel %vm674, %v1436, 0.0
    %1447 = vadd.xlane.f32.xlu0 %v1446
    %v1448 = vpop.xlane.xlu0 %1447
    %v1449 = vsel %vm674, %v1443, 0.0
    %1450 = vadd.xlane.f32.xlu0 %v1449
    %v1451 = vpop.xlane.xlu0 %1450
    %v1452 = vrcp.pop %v1448
    %v1453 = vrcp.pop %v1451
    %v1456 = vlaneseq
    %v1457 = vshrl.u32 %v1456, 7
    %v1458 = vsub.s32 0, %v1457
    %v1459 = vrot.slane %v1452, %v1458
    %v1460 = vlaneseq
    %v1461 = vshrl.u32 %v1460, 7
    %v1462 = vsub.s32 1, %v1461
    %v1463 = vrot.slane %v1452, %v1462
    %v1464 = vlaneseq
    %v1465 = vshrl.u32 %v1464, 7
    %v1466 = vsub.s32 2, %v1465
    %v1467 = vrot.slane %v1452, %v1466
    %v1468 = vlaneseq
    %v1469 = vshrl.u32 %v1468, 7
    %v1470 = vsub.s32 3, %v1469
    %v1471 = vrot.slane %v1452, %v1470
    %v1472 = vlaneseq
    %v1473 = vshrl.u32 %v1472, 7
    %v1474 = vsub.s32 4, %v1473
    %v1475 = vrot.slane %v1452, %v1474
    %v1476 = vlaneseq
    %v1477 = vshrl.u32 %v1476, 7
    %v1478 = vsub.s32 5, %v1477
    %v1479 = vrot.slane %v1452, %v1478
    %v1480 = vlaneseq
    %v1481 = vshrl.u32 %v1480, 7
    %v1482 = vsub.s32 6, %v1481
    %v1483 = vrot.slane %v1452, %v1482
    %v1484 = vlaneseq
    %v1485 = vshrl.u32 %v1484, 7
    %v1486 = vsub.s32 7, %v1485
    %v1487 = vrot.slane %v1452, %v1486
    %v1488 = vlaneseq
    %v1489 = vshrl.u32 %v1488, 7
    %v1490 = vsub.s32 0, %v1489
    %v1491 = vrot.slane %v1453, %v1490
    %v1492 = vlaneseq
    %v1493 = vshrl.u32 %v1492, 7
    %v1494 = vsub.s32 1, %v1493
    %v1495 = vrot.slane %v1453, %v1494
    %v1496 = vlaneseq
    %v1497 = vshrl.u32 %v1496, 7
    %v1498 = vsub.s32 2, %v1497
    %v1499 = vrot.slane %v1453, %v1498
    %v1500 = vlaneseq
    %v1501 = vshrl.u32 %v1500, 7
    %v1502 = vsub.s32 3, %v1501
    %v1503 = vrot.slane %v1453, %v1502
    %v1504 = vlaneseq
    %v1505 = vshrl.u32 %v1504, 7
    %v1506 = vsub.s32 4, %v1505
    %v1507 = vrot.slane %v1453, %v1506
    %v1508 = vlaneseq
    %v1509 = vshrl.u32 %v1508, 7
    %v1510 = vsub.s32 5, %v1509
    %v1511 = vrot.slane %v1453, %v1510
    %v1512 = vlaneseq
    %v1513 = vshrl.u32 %v1512, 7
    %v1514 = vsub.s32 6, %v1513
    %v1515 = vrot.slane %v1453, %v1514
    %v1516 = vlaneseq
    %v1517 = vshrl.u32 %v1516, 7
    %v1518 = vsub.s32 7, %v1517
    %v1519 = vrot.slane %v1453, %v1518
    %v1536 = vmul.f32 %v1095, %v1459
    %v1537 = vmul.f32 %v1097, %v1459
    %v1538 = vmul.f32 %v1099, %v1463
    %v1539 = vmul.f32 %v1101, %v1463
    %v1540 = vmul.f32 %v1103, %v1467
    %v1541 = vmul.f32 %v1105, %v1467
    %v1542 = vmul.f32 %v1107, %v1471
    %v1543 = vmul.f32 %v1109, %v1471
    %v1544 = vmul.f32 %v1111, %v1475
    %v1545 = vmul.f32 %v1113, %v1475
    %v1546 = vmul.f32 %v1115, %v1479
    %v1547 = vmul.f32 %v1117, %v1479
    %v1548 = vmul.f32 %v1119, %v1483
    %v1549 = vmul.f32 %v1121, %v1483
    %v1550 = vmul.f32 %v1123, %v1487
    %v1551 = vmul.f32 %v1125, %v1487
    %v1552 = vmul.f32 %v1127, %v1491
    %v1553 = vmul.f32 %v1129, %v1491
    %v1554 = vmul.f32 %v1131, %v1495
    %v1555 = vmul.f32 %v1133, %v1495
    %v1556 = vmul.f32 %v1135, %v1499
    %v1557 = vmul.f32 %v1137, %v1499
    %v1558 = vmul.f32 %v1139, %v1503
    %v1559 = vmul.f32 %v1141, %v1503
    %v1560 = vmul.f32 %v1143, %v1507
    %v1561 = vmul.f32 %v1145, %v1507
    %v1562 = vmul.f32 %v1147, %v1511
    %v1563 = vmul.f32 %v1149, %v1511
    %v1564 = vmul.f32 %v1151, %v1515
    %v1565 = vmul.f32 %v1153, %v1515
    %v1566 = vmul.f32 %v1155, %v1519
    %v1567 = vmul.f32 %v1157, %v1519
    %1569 = vset.pattern.permute.xlu0 0
    %1570 = vperm.xlu0 %1569, %v1536
    %v1571 = vpop.permute.xlu0 %1570
    %1574 = vset.pattern.permute.xlu0 0
    %1575 = vperm.xlu0 %1574, %v1537
    %v1576 = vpop.permute.xlu0 %1575
    %1579 = vset.pattern.permute.xlu0 0
    %1580 = vperm.xlu0 %1579, %v1538
    %v1581 = vpop.permute.xlu0 %1580
    %1584 = vset.pattern.permute.xlu0 0
    %1585 = vperm.xlu0 %1584, %v1539
    %v1586 = vpop.permute.xlu0 %1585
    %1589 = vset.pattern.permute.xlu0 0
    %1590 = vperm.xlu0 %1589, %v1540
    %v1591 = vpop.permute.xlu0 %1590
    %1594 = vset.pattern.permute.xlu0 0
    %1595 = vperm.xlu0 %1594, %v1541
    %v1596 = vpop.permute.xlu0 %1595
    %1599 = vset.pattern.permute.xlu0 0
    %1600 = vperm.xlu0 %1599, %v1542
    %v1601 = vpop.permute.xlu0 %1600
    %1604 = vset.pattern.permute.xlu0 0
    %1605 = vperm.xlu0 %1604, %v1543
    %v1606 = vpop.permute.xlu0 %1605
    %1609 = vset.pattern.permute.xlu0 0
    %1610 = vperm.xlu0 %1609, %v1544
    %v1611 = vpop.permute.xlu0 %1610
    %1614 = vset.pattern.permute.xlu0 0
    %1615 = vperm.xlu0 %1614, %v1545
    %v1616 = vpop.permute.xlu0 %1615
    %1619 = vset.pattern.permute.xlu0 0
    %1620 = vperm.xlu0 %1619, %v1546
    %v1621 = vpop.permute.xlu0 %1620
    %1624 = vset.pattern.permute.xlu0 0
    %1625 = vperm.xlu0 %1624, %v1547
    %v1626 = vpop.permute.xlu0 %1625
    %1629 = vset.pattern.permute.xlu0 0
    %1630 = vperm.xlu0 %1629, %v1548
    %v1631 = vpop.permute.xlu0 %1630
    %1634 = vset.pattern.permute.xlu0 0
    %1635 = vperm.xlu0 %1634, %v1549
    %v1636 = vpop.permute.xlu0 %1635
    %1639 = vset.pattern.permute.xlu0 0
    %1640 = vperm.xlu0 %1639, %v1550
    %v1641 = vpop.permute.xlu0 %1640
    %1644 = vset.pattern.permute.xlu0 0
    %1645 = vperm.xlu0 %1644, %v1551
    %v1646 = vpop.permute.xlu0 %1645
    %1649 = vset.pattern.permute.xlu0 0
    %1650 = vperm.xlu0 %1649, %v1552
    %v1651 = vpop.permute.xlu0 %1650
    %1654 = vset.pattern.permute.xlu0 0
    %1655 = vperm.xlu0 %1654, %v1553
    %v1656 = vpop.permute.xlu0 %1655
    %1659 = vset.pattern.permute.xlu0 0
    %1660 = vperm.xlu0 %1659, %v1554
    %v1661 = vpop.permute.xlu0 %1660
    %1664 = vset.pattern.permute.xlu0 0
    %1665 = vperm.xlu0 %1664, %v1555
    %v1666 = vpop.permute.xlu0 %1665
    %1669 = vset.pattern.permute.xlu0 0
    %1670 = vperm.xlu0 %1669, %v1556
    %v1671 = vpop.permute.xlu0 %1670
    %1674 = vset.pattern.permute.xlu0 0
    %1675 = vperm.xlu0 %1674, %v1557
    %v1676 = vpop.permute.xlu0 %1675
    %1679 = vset.pattern.permute.xlu0 0
    %1680 = vperm.xlu0 %1679, %v1558
    %v1681 = vpop.permute.xlu0 %1680
    %1684 = vset.pattern.permute.xlu0 0
    %1685 = vperm.xlu0 %1684, %v1559
    %v1686 = vpop.permute.xlu0 %1685
    %1689 = vset.pattern.permute.xlu0 0
    %1690 = vperm.xlu0 %1689, %v1560
    %v1691 = vpop.permute.xlu0 %1690
    %1694 = vset.pattern.permute.xlu0 0
    %1695 = vperm.xlu0 %1694, %v1561
    %v1696 = vpop.permute.xlu0 %1695
    %1699 = vset.pattern.permute.xlu0 0
    %1700 = vperm.xlu0 %1699, %v1562
    %v1701 = vpop.permute.xlu0 %1700
    %1704 = vset.pattern.permute.xlu0 0
    %1705 = vperm.xlu0 %1704, %v1563
    %v1706 = vpop.permute.xlu0 %1705
    %1709 = vset.pattern.permute.xlu0 0
    %1710 = vperm.xlu0 %1709, %v1564
    %v1711 = vpop.permute.xlu0 %1710
    %1714 = vset.pattern.permute.xlu0 0
    %1715 = vperm.xlu0 %1714, %v1565
    %v1716 = vpop.permute.xlu0 %1715
    %1719 = vset.pattern.permute.xlu0 0
    %1720 = vperm.xlu0 %1719, %v1566
    %v1721 = vpop.permute.xlu0 %1720
    %1724 = vset.pattern.permute.xlu0 0
    %1725 = vperm.xlu0 %1724, %v1567
    %v1726 = vpop.permute.xlu0 %1725
    %v1728 = vmul.f32 %v1571, %v31
    %v1729 = vmul.f32 %v1576, %v32
    %v1730 = vmul.f32 %v1581, %v33
    %v1731 = vmul.f32 %v1586, %v34
    %v1732 = vmul.f32 %v1591, %v35
    %v1733 = vmul.f32 %v1596, %v36
    %v1734 = vmul.f32 %v1601, %v37
    %v1735 = vmul.f32 %v1606, %v38
    %v1736 = vmul.f32 %v1611, %v39
    %v1737 = vmul.f32 %v1616, %v40
    %v1738 = vmul.f32 %v1621, %v41
    %v1739 = vmul.f32 %v1626, %v42
    %v1740 = vmul.f32 %v1631, %v43
    %v1741 = vmul.f32 %v1636, %v44
    %v1742 = vmul.f32 %v1641, %v45
    %v1743 = vmul.f32 %v1646, %v46
    %v1744 = vmul.f32 %v1651, %v47
    %v1745 = vmul.f32 %v1656, %v48
    %v1746 = vmul.f32 %v1661, %v49
    %v1747 = vmul.f32 %v1666, %v50
    %v1748 = vmul.f32 %v1671, %v51
    %v1749 = vmul.f32 %v1676, %v52
    %v1750 = vmul.f32 %v1681, %v53
    %v1751 = vmul.f32 %v1686, %v54
    %v1752 = vmul.f32 %v1691, %v55
    %v1753 = vmul.f32 %v1696, %v56
    %v1754 = vmul.f32 %v1701, %v57
    %v1755 = vmul.f32 %v1706, %v58
    %v1756 = vmul.f32 %v1711, %v59
    %v1757 = vmul.f32 %v1716, %v60
    %v1758 = vmul.f32 %v1721, %v61
    %v1759 = vmul.f32 %v1726, %v62
    %v1760 = vsel %vm67, %v1728, 0.0
    %v1761 = vsel %vm67, %v1729, 0.0
    %v1762 = vadd.f32 %v1760, %v1761
    %v1763 = vrot.slane %v1762, 4
    %v1764 = vadd.f32 %v1762, %v1763
    %v1765 = vrot.slane %v1764, 2
    %v1766 = vadd.f32 %v1764, %v1765
    %v1767 = vrot.slane %v1766, 1
    %v1768 = vadd.f32 %v1766, %v1767
    %v1769 = vsel %vm67, %v1730, 0.0
    %v1770 = vsel %vm67, %v1731, 0.0
    %v1771 = vadd.f32 %v1769, %v1770
    %v1772 = vrot.slane %v1771, 4
    %v1773 = vadd.f32 %v1771, %v1772
    %v1774 = vrot.slane %v1773, 2
    %v1775 = vadd.f32 %v1773, %v1774
    %v1776 = vrot.slane %v1775, 1
    %v1777 = vadd.f32 %v1775, %v1776
    %v1778 = vsel %vm67, %v1732, 0.0
    %v1779 = vsel %vm67, %v1733, 0.0
    %v1780 = vadd.f32 %v1778, %v1779
    %v1781 = vrot.slane %v1780, 4
    %v1782 = vadd.f32 %v1780, %v1781
    %v1783 = vrot.slane %v1782, 2
    %v1784 = vadd.f32 %v1782, %v1783
    %v1785 = vrot.slane %v1784, 1
    %v1786 = vadd.f32 %v1784, %v1785
    %v1787 = vsel %vm67, %v1734, 0.0
    %v1788 = vsel %vm67, %v1735, 0.0
    %v1789 = vadd.f32 %v1787, %v1788
    %v1790 = vrot.slane %v1789, 4
    %v1791 = vadd.f32 %v1789, %v1790
    %v1792 = vrot.slane %v1791, 2
    %v1793 = vadd.f32 %v1791, %v1792
    %v1794 = vrot.slane %v1793, 1
    %v1795 = vadd.f32 %v1793, %v1794
    %v1796 = vsel %vm67, %v1736, 0.0
    %v1797 = vsel %vm67, %v1737, 0.0
    %v1798 = vadd.f32 %v1796, %v1797
    %v1799 = vrot.slane %v1798, 4
    %v1800 = vadd.f32 %v1798, %v1799
    %v1801 = vrot.slane %v1800, 2
    %v1802 = vadd.f32 %v1800, %v1801
    %v1803 = vrot.slane %v1802, 1
    %v1804 = vadd.f32 %v1802, %v1803
    %v1805 = vsel %vm67, %v1738, 0.0
    %v1806 = vsel %vm67, %v1739, 0.0
    %v1807 = vadd.f32 %v1805, %v1806
    %v1808 = vrot.slane %v1807, 4
    %v1809 = vadd.f32 %v1807, %v1808
    %v1810 = vrot.slane %v1809, 2
    %v1811 = vadd.f32 %v1809, %v1810
    %v1812 = vrot.slane %v1811, 1
    %v1813 = vadd.f32 %v1811, %v1812
    %v1814 = vsel %vm67, %v1740, 0.0
    %v1815 = vsel %vm67, %v1741, 0.0
    %v1816 = vadd.f32 %v1814, %v1815
    %v1817 = vrot.slane %v1816, 4
    %v1818 = vadd.f32 %v1816, %v1817
    %v1819 = vrot.slane %v1818, 2
    %v1820 = vadd.f32 %v1818, %v1819
    %v1821 = vrot.slane %v1820, 1
    %v1822 = vadd.f32 %v1820, %v1821
    %v1823 = vsel %vm67, %v1742, 0.0
    %v1824 = vsel %vm67, %v1743, 0.0
    %v1825 = vadd.f32 %v1823, %v1824
    %v1826 = vrot.slane %v1825, 4
    %v1827 = vadd.f32 %v1825, %v1826
    %v1828 = vrot.slane %v1827, 2
    %v1829 = vadd.f32 %v1827, %v1828
    %v1830 = vrot.slane %v1829, 1
    %v1831 = vadd.f32 %v1829, %v1830
    %v1832 = vsel %vm67, %v1744, 0.0
    %v1833 = vsel %vm67, %v1745, 0.0
    %v1834 = vadd.f32 %v1832, %v1833
    %v1835 = vrot.slane %v1834, 4
    %v1836 = vadd.f32 %v1834, %v1835
    %v1837 = vrot.slane %v1836, 2
    %v1838 = vadd.f32 %v1836, %v1837
    %v1839 = vrot.slane %v1838, 1
    %v1840 = vadd.f32 %v1838, %v1839
    %v1841 = vsel %vm67, %v1746, 0.0
    %v1842 = vsel %vm67, %v1747, 0.0
    %v1843 = vadd.f32 %v1841, %v1842
    %v1844 = vrot.slane %v1843, 4
    %v1845 = vadd.f32 %v1843, %v1844
    %v1846 = vrot.slane %v1845, 2
    %v1847 = vadd.f32 %v1845, %v1846
    %v1848 = vrot.slane %v1847, 1
    %v1849 = vadd.f32 %v1847, %v1848
    %v1850 = vsel %vm67, %v1748, 0.0
    %v1851 = vsel %vm67, %v1749, 0.0
    %v1852 = vadd.f32 %v1850, %v1851
    %v1853 = vrot.slane %v1852, 4
    %v1854 = vadd.f32 %v1852, %v1853
    %v1855 = vrot.slane %v1854, 2
    %v1856 = vadd.f32 %v1854, %v1855
    %v1857 = vrot.slane %v1856, 1
    %v1858 = vadd.f32 %v1856, %v1857
    %v1859 = vsel %vm67, %v1750, 0.0
    %v1860 = vsel %vm67, %v1751, 0.0
    %v1861 = vadd.f32 %v1859, %v1860
    %v1862 = vrot.slane %v1861, 4
    %v1863 = vadd.f32 %v1861, %v1862
    %v1864 = vrot.slane %v1863, 2
    %v1865 = vadd.f32 %v1863, %v1864
    %v1866 = vrot.slane %v1865, 1
    %v1867 = vadd.f32 %v1865, %v1866
    %v1868 = vsel %vm67, %v1752, 0.0
    %v1869 = vsel %vm67, %v1753, 0.0
    %v1870 = vadd.f32 %v1868, %v1869
    %v1871 = vrot.slane %v1870, 4
    %v1872 = vadd.f32 %v1870, %v1871
    %v1873 = vrot.slane %v1872, 2
    %v1874 = vadd.f32 %v1872, %v1873
    %v1875 = vrot.slane %v1874, 1
    %v1876 = vadd.f32 %v1874, %v1875
    %v1877 = vsel %vm67, %v1754, 0.0
    %v1878 = vsel %vm67, %v1755, 0.0
    %v1879 = vadd.f32 %v1877, %v1878
    %v1880 = vrot.slane %v1879, 4
    %v1881 = vadd.f32 %v1879, %v1880
    %v1882 = vrot.slane %v1881, 2
    %v1883 = vadd.f32 %v1881, %v1882
    %v1884 = vrot.slane %v1883, 1
    %v1885 = vadd.f32 %v1883, %v1884
    %v1886 = vsel %vm67, %v1756, 0.0
    %v1887 = vsel %vm67, %v1757, 0.0
    %v1888 = vadd.f32 %v1886, %v1887
    %v1889 = vrot.slane %v1888, 4
    %v1890 = vadd.f32 %v1888, %v1889
    %v1891 = vrot.slane %v1890, 2
    %v1892 = vadd.f32 %v1890, %v1891
    %v1893 = vrot.slane %v1892, 1
    %v1894 = vadd.f32 %v1892, %v1893
    %v1895 = vsel %vm67, %v1758, 0.0
    %v1896 = vsel %vm67, %v1759, 0.0
    %v1897 = vadd.f32 %v1895, %v1896
    %v1898 = vrot.slane %v1897, 4
    %v1899 = vadd.f32 %v1897, %v1898
    %v1900 = vrot.slane %v1899, 2
    %v1901 = vadd.f32 %v1899, %v1900
    %v1902 = vrot.slane %v1901, 1
    %v1903 = vadd.f32 %v1901, %v1902
    %v1920 = vsel %vm951, %v1777, %v1768
    %v1921 = vsel %vm953, %v1786, %v1920
    %v1922 = vsel %vm955, %v1795, %v1921
    %v1923 = vsel %vm957, %v1804, %v1922
    %v1924 = vsel %vm959, %v1813, %v1923
    %v1925 = vsel %vm961, %v1822, %v1924
    %v1926 = vsel %vm963, %v1831, %v1925
    %v1927 = vsel %vm951, %v1849, %v1840
    %v1928 = vsel %vm953, %v1858, %v1927
    %v1929 = vsel %vm955, %v1867, %v1928
    %v1930 = vsel %vm957, %v1876, %v1929
    %v1931 = vsel %vm959, %v1885, %v1930
    %v1932 = vsel %vm961, %v1894, %v1931
    %v1933 = vsel %vm963, %v1903, %v1932
    %v1936 = vadd.s32 %v804, 4294967264
    %v1937 = vlaneseq
    %v1938 = vshrl.u32 %v1937, 7
    %v1939 = vsub.s32 %v1936, %v1938
    %v1940 = vrot.slane %v1571, %v1939
    %v1941 = vadd.s32 %v804, 4294967256
    %v1942 = vlaneseq
    %v1943 = vshrl.u32 %v1942, 7
    %v1944 = vsub.s32 %v1941, %v1943
    %v1945 = vrot.slane %v1576, %v1944
    %vm1946 = vcmask 392512
    %v1947 = vsel %vm1946, %v1945, %v1940
    %v1948 = vlaneseq
    %v1949 = vshrl.u32 %v1948, 7
    %v1950 = vsub.s32 %v1936, %v1949
    %v1951 = vrot.slane %v1581, %v1950
    %v1952 = vlaneseq
    %v1953 = vshrl.u32 %v1952, 7
    %v1954 = vsub.s32 %v1941, %v1953
    %v1955 = vrot.slane %v1586, %v1954
    %v1956 = vsel %vm1946, %v1955, %v1951
    %v1957 = vlaneseq
    %v1958 = vshrl.u32 %v1957, 7
    %v1959 = vsub.s32 %v1936, %v1958
    %v1960 = vrot.slane %v1591, %v1959
    %v1961 = vlaneseq
    %v1962 = vshrl.u32 %v1961, 7
    %v1963 = vsub.s32 %v1941, %v1962
    %v1964 = vrot.slane %v1596, %v1963
    %v1965 = vsel %vm1946, %v1964, %v1960
    %v1966 = vlaneseq
    %v1967 = vshrl.u32 %v1966, 7
    %v1968 = vsub.s32 %v1936, %v1967
    %v1969 = vrot.slane %v1601, %v1968
    %v1970 = vlaneseq
    %v1971 = vshrl.u32 %v1970, 7
    %v1972 = vsub.s32 %v1941, %v1971
    %v1973 = vrot.slane %v1606, %v1972
    %v1974 = vsel %vm1946, %v1973, %v1969
    %v1975 = vlaneseq
    %v1976 = vshrl.u32 %v1975, 7
    %v1977 = vsub.s32 %v1936, %v1976
    %v1978 = vrot.slane %v1611, %v1977
    %v1979 = vlaneseq
    %v1980 = vshrl.u32 %v1979, 7
    %v1981 = vsub.s32 %v1941, %v1980
    %v1982 = vrot.slane %v1616, %v1981
    %v1983 = vsel %vm1946, %v1982, %v1978
    %v1984 = vlaneseq
    %v1985 = vshrl.u32 %v1984, 7
    %v1986 = vsub.s32 %v1936, %v1985
    %v1987 = vrot.slane %v1621, %v1986
    %v1988 = vlaneseq
    %v1989 = vshrl.u32 %v1988, 7
    %v1990 = vsub.s32 %v1941, %v1989
    %v1991 = vrot.slane %v1626, %v1990
    %v1992 = vsel %vm1946, %v1991, %v1987
    %v1993 = vlaneseq
    %v1994 = vshrl.u32 %v1993, 7
    %v1995 = vsub.s32 %v1936, %v1994
    %v1996 = vrot.slane %v1631, %v1995
    %v1997 = vlaneseq
    %v1998 = vshrl.u32 %v1997, 7
    %v1999 = vsub.s32 %v1941, %v1998
    %v2000 = vrot.slane %v1636, %v1999
    %v2001 = vsel %vm1946, %v2000, %v1996
    %v2002 = vlaneseq
    %v2003 = vshrl.u32 %v2002, 7
    %v2004 = vsub.s32 %v1936, %v2003
    %v2005 = vrot.slane %v1641, %v2004
    %v2006 = vlaneseq
    %v2007 = vshrl.u32 %v2006, 7
    %v2008 = vsub.s32 %v1941, %v2007
    %v2009 = vrot.slane %v1646, %v2008
    %v2010 = vsel %vm1946, %v2009, %v2005
    %v2011 = vlaneseq
    %v2012 = vshrl.u32 %v2011, 7
    %v2013 = vsub.s32 %v1936, %v2012
    %v2014 = vrot.slane %v1651, %v2013
    %v2015 = vlaneseq
    %v2016 = vshrl.u32 %v2015, 7
    %v2017 = vsub.s32 %v1941, %v2016
    %v2018 = vrot.slane %v1656, %v2017
    %v2019 = vsel %vm1946, %v2018, %v2014
    %v2020 = vlaneseq
    %v2021 = vshrl.u32 %v2020, 7
    %v2022 = vsub.s32 %v1936, %v2021
    %v2023 = vrot.slane %v1661, %v2022
    %v2024 = vlaneseq
    %v2025 = vshrl.u32 %v2024, 7
    %v2026 = vsub.s32 %v1941, %v2025
    %v2027 = vrot.slane %v1666, %v2026
    %v2028 = vsel %vm1946, %v2027, %v2023
    %v2029 = vlaneseq
    %v2030 = vshrl.u32 %v2029, 7
    %v2031 = vsub.s32 %v1936, %v2030
    %v2032 = vrot.slane %v1671, %v2031
    %v2033 = vlaneseq
    %v2034 = vshrl.u32 %v2033, 7
    %v2035 = vsub.s32 %v1941, %v2034
    %v2036 = vrot.slane %v1676, %v2035
    %v2037 = vsel %vm1946, %v2036, %v2032
    %v2038 = vlaneseq
    %v2039 = vshrl.u32 %v2038, 7
    %v2040 = vsub.s32 %v1936, %v2039
    %v2041 = vrot.slane %v1681, %v2040
    %v2042 = vlaneseq
    %v2043 = vshrl.u32 %v2042, 7
    %v2044 = vsub.s32 %v1941, %v2043
    %v2045 = vrot.slane %v1686, %v2044
    %v2046 = vsel %vm1946, %v2045, %v2041
    %v2047 = vlaneseq
    %v2048 = vshrl.u32 %v2047, 7
    %v2049 = vsub.s32 %v1936, %v2048
    %v2050 = vrot.slane %v1691, %v2049
    %v2051 = vlaneseq
    %v2052 = vshrl.u32 %v2051, 7
    %v2053 = vsub.s32 %v1941, %v2052
    %v2054 = vrot.slane %v1696, %v2053
    %v2055 = vsel %vm1946, %v2054, %v2050
    %v2056 = vlaneseq
    %v2057 = vshrl.u32 %v2056, 7
    %v2058 = vsub.s32 %v1936, %v2057
    %v2059 = vrot.slane %v1701, %v2058
    %v2060 = vlaneseq
    %v2061 = vshrl.u32 %v2060, 7
    %v2062 = vsub.s32 %v1941, %v2061
    %v2063 = vrot.slane %v1706, %v2062
    %v2064 = vsel %vm1946, %v2063, %v2059
    %v2065 = vlaneseq
    %v2066 = vshrl.u32 %v2065, 7
    %v2067 = vsub.s32 %v1936, %v2066
    %v2068 = vrot.slane %v1711, %v2067
    %v2069 = vlaneseq
    %v2070 = vshrl.u32 %v2069, 7
    %v2071 = vsub.s32 %v1941, %v2070
    %v2072 = vrot.slane %v1716, %v2071
    %v2073 = vsel %vm1946, %v2072, %v2068
    %v2074 = vlaneseq
    %v2075 = vshrl.u32 %v2074, 7
    %v2076 = vsub.s32 %v1936, %v2075
    %v2077 = vrot.slane %v1721, %v2076
    %v2078 = vlaneseq
    %v2079 = vshrl.u32 %v2078, 7
    %v2080 = vsub.s32 %v1941, %v2079
    %v2081 = vrot.slane %v1726, %v2080
    %v2082 = vsel %vm1946, %v2081, %v2077
    %v2083 = vsel %vm951, %v1956, %v1947
    %v2084 = vsel %vm953, %v1965, %v2083
    %v2085 = vsel %vm955, %v1974, %v2084
    %v2086 = vsel %vm957, %v1983, %v2085
    %v2087 = vsel %vm959, %v1992, %v2086
    %v2088 = vsel %vm961, %v2001, %v2087
    %v2089 = vsel %vm963, %v2010, %v2088
    %v2090 = vsel %vm951, %v2028, %v2019
    %v2091 = vsel %vm953, %v2037, %v2090
    %v2092 = vsel %vm955, %v2046, %v2091
    %v2093 = vsel %vm957, %v2055, %v2092
    %v2094 = vsel %vm959, %v2064, %v2093
    %v2095 = vsel %vm961, %v2073, %v2094
    %v2096 = vsel %vm963, %v2082, %v2095
    %v2099 = vsel %vm67, %v1926, %v2089
    %v2100 = vsel %vm67, %v1933, %v2096
    %vm2101 = vcmask 392192
    %2102 = vst.msk [vmem:[%s4] sm:$0xff] %vm2101, %v2099
    %2103 = vst.msk [vmem:[%s4 + $0x8] sm:$0xff] %vm2101, %v2100
    // Predicated region
    $region22: #{vis_attention.1} parent=1 // pred_check
      _
    $region23: #{vis_attention.1} parent=1 // pred_check_branch
      %2105 = sbr.rel (0) target = $region25
    $region24: #{vis_attention.1} parent=1 // pred_region
      _
    $region25: #{vis_attention.1} parent=1 // pred_fallthru
      _
    // Predicated region
    $region26: #{vis_attention.1} parent=1 // pred_check
      _
    $region27: #{vis_attention.1} parent=1 // pred_check_branch
      %2107 = sbr.rel (0) target = $region29
    $region28: #{vis_attention.1} parent=1 // pred_region
      _
    $region29: #{vis_attention.1} parent=1 // pred_fallthru
      _
    %2108 = vsyncpa [#allocation3], 1

</llo_original>
